<compile_context>
chip_gen: v7x
topology: tpu7x:2x2x1
jax: 0.10.0
libtpu: 0.0.40
codegen_flags: <defaults>
</compile_context>

<pallas_src>
import jax
import jax.numpy as jnp
from jax import lax
from jax.experimental import pallas as pl
from jax.experimental.pallas import tpu as pltpu


def ner_lstm_fc_kernel(tok_ref, embp_ref, whh_ref, wfc_ref, bfc_ref, out_ref):
    """
    tok_ref : (B, T)       int32 tokens (scalar-prefetched into SMEM)
    embp_ref: (V, 1, 4H)   embedding rows pre-projected through W_ih^T, biases folded
    whh_ref : (H, 4H)      hidden->gates weights (pre-transposed)
    wfc_ref : (H, T*B*C)   fc weights (pre-transposed), lane-tiled T*B times
    bfc_ref : (1, T*B*C)   fc bias, lane-tiled T*B times
    out_ref : (1, T*B*C)   logits, t-major flat (lane-dense store)
    """
    B, T = tok_ref.shape
    V = embp_ref.shape[0]
    H = whh_ref.shape[0]
    TB = T * B
    TBC = out_ref.shape[1]
    C = TBC // TB

    # ---- Prologue: fused embedding gather of all pre-projected rows, t-major.
    # xg_all[t*B + b] = emb[tok[b, t]] @ W_ih^T + (b_ih + b_hh)
    rows = [embp_ref[jnp.clip(tok_ref[b, t], 0, V - 1)]            # each (1, 4H)
            for t in range(T) for b in range(B)]
    xg_all = jnp.concatenate(rows, axis=0)                          # (T*B, 4H)

    # ---- Recurrence: only h @ W_hh (single-pass bf16 MXU) on the serial path.
    whh_bf = whh_ref[...].astype(jnp.bfloat16)                      # (H, 4H)
    h = jnp.zeros((B, H), jnp.float32)
    c = jnp.zeros((B, H), jnp.float32)
    hs = []
    for t in range(T):                                              # T static -> unrolled
        gates = xg_all[t * B:(t + 1) * B, :] + jnp.dot(
            h.astype(jnp.bfloat16), whh_bf, preferred_element_type=jnp.float32)
        # Two full-(B,4H)-vreg transcendentals instead of four narrow EUP pushes.
        sg = jax.nn.sigmoid(gates)
        tg = jnp.tanh(gates)
        i_g = sg[:, 0 * H:1 * H]        # PyTorch gate order: i, f, g, o
        f_g = sg[:, 1 * H:2 * H]
        g_g = tg[:, 2 * H:3 * H]
        o_g = sg[:, 3 * H:4 * H]
        c = f_g * c + i_g * g_g
        h = o_g * jnp.tanh(c)
        hs.append(h)

    # ---- Epilogue: one time-major concat, one matmul, one lane-dense store.
    h_all = jnp.concatenate(hs, axis=0)                             # (T*B, H), t-major
    # wfc is lane-tiled: p[i, q*C + j] = logits[i, j]; select the q == i block.
    p = jnp.dot(h_all, wfc_ref[...], preferred_element_type=jnp.float32)  # (T*B, T*B*C)
    lane = lax.broadcasted_iota(jnp.int32, (TB, TBC), 1)
    row = lax.broadcasted_iota(jnp.int32, (TB, TBC), 0)
    lo = row * C
    sel = jnp.logical_and(lane >= lo, lane < lo + C)
    flat = jnp.sum(jnp.where(sel, p, 0.0), axis=0, keepdims=True) + bfc_ref[...]
    out_ref[...] = flat.astype(out_ref.dtype)                       # single unmasked vst


def init_params(key, vocab_size, num_classes, hidden_dim, embedding_dim):
    k_emb, k_wih, k_whh, k_bih, k_bhh, k_fc = jax.random.split(key, 6)

    # embedding.weight.data.uniform_(-1.0, 1.0)
    embedding = jax.random.uniform(k_emb, (vocab_size, embedding_dim),
                                   jnp.float32, minval=-1.0, maxval=1.0)

    # nn.LSTM default init: U(-1/sqrt(H), 1/sqrt(H)); gate order i, f, g, o.
    k = 1.0 / jnp.sqrt(hidden_dim)
    w_ih = jax.random.uniform(k_wih, (4 * hidden_dim, embedding_dim),
                              jnp.float32, minval=-k, maxval=k)
    w_hh = jax.random.uniform(k_whh, (4 * hidden_dim, hidden_dim),
                              jnp.float32, minval=-k, maxval=k)
    b_ih = jax.random.uniform(k_bih, (4 * hidden_dim,), jnp.float32, minval=-k, maxval=k)
    b_hh = jax.random.uniform(k_bhh, (4 * hidden_dim,), jnp.float32, minval=-k, maxval=k)

    # fc: xavier_uniform_ weight (C, H), zero bias
    bound = jnp.sqrt(6.0 / (hidden_dim + num_classes))
    w_fc = jax.random.uniform(k_fc, (num_classes, hidden_dim), jnp.float32,
                              minval=-bound, maxval=bound)
    b_fc = jnp.zeros((num_classes,), jnp.float32)

    # Raw (PyTorch-layout) params, used by the pure-JAX reference.
    raw = dict(embedding=embedding, w_ih=w_ih, w_hh=w_hh, b_ih=b_ih, b_hh=b_hh,
               w_fc=w_fc, b_fc=b_fc)

    # Kernel-ready params: fold the input projection + both biases into the
    # embedding table (exactly the same per-row dot products as x @ W_ih^T).
    emb_proj = (embedding @ w_ih.T + b_ih + b_hh)[:, None, :]       # (V, 1, 4H)
    kernel = dict(
        emb_proj=emb_proj,
        w_hh_T=w_hh.T,               # (H, 4H)
        w_fc_T=w_fc.T,               # (H, C)
        b_fc=b_fc[None, :],          # (1, C)
    )
    return raw, kernel


def ner_forward(tokens, kparams):
    """tokens: (B, T) int32 -> logits (B, T, C) float32 (batch-first like PyTorch)."""
    B, T = tokens.shape
    V, _, G = kparams["emb_proj"].shape      # G = 4H
    H = kparams["w_hh_T"].shape[0]
    C = kparams["w_fc_T"].shape[1]
    TB = T * B
    TBC = TB * C

    # Lane-tile the FC weight/bias so the kernel's output is a lane-dense slab.
    w_fc_tiled = jnp.tile(kparams["w_fc_T"], (1, TB))               # (H, T*B*C)
    b_fc_tiled = jnp.tile(kparams["b_fc"], (1, TB))                 # (1, T*B*C)

    grid_spec = pltpu.PrefetchScalarGridSpec(
        num_scalar_prefetch=1,               # tokens -> SMEM
        grid=(1,),                           # single-block launch (no tiling)
        in_specs=[
            pl.BlockSpec((V, 1, G), lambda i, tok: (0, 0, 0)),
            pl.BlockSpec((H, G), lambda i, tok: (0, 0)),
            pl.BlockSpec((H, TBC), lambda i, tok: (0, 0)),
            pl.BlockSpec((1, TBC), lambda i, tok: (0, 0)),
        ],
        out_specs=pl.BlockSpec((1, TBC), lambda i, tok: (0, 0)),
    )
    flat = pl.pallas_call(
        ner_lstm_fc_kernel,
        out_shape=jax.ShapeDtypeStruct((1, TBC), jnp.float32),
        grid_spec=grid_spec,
        compiler_params=pltpu.CompilerParams(dimension_semantics=("arbitrary",)),
    )(tokens, kparams["emb_proj"], kparams["w_hh_T"], w_fc_tiled, b_fc_tiled)

    # Kernel emits t-major flat (T, B, C); tiny wrapper transpose to batch-first.
    return jnp.transpose(flat.reshape(T, B, C), (1, 0, 2))


def ner_forward_ref(tokens, raw):
    """Pure-JAX reference with PyTorch semantics (embedding -> LSTM -> fc)."""
    x = jnp.take(raw["embedding"], tokens, axis=0)                  # (B, T, E)
    B, T, E = x.shape
    H = raw["w_hh"].shape[1]
    w_ih_T = raw["w_ih"].T
    w_hh_T = raw["w_hh"].T
    b = (raw["b_ih"] + raw["b_hh"])[None, :]

    def step(carry, x_t):
        h, c = carry
        gates = x_t @ w_ih_T + h @ w_hh_T + b
        i = jax.nn.sigmoid(gates[:, 0 * H:1 * H])
        f = jax.nn.sigmoid(gates[:, 1 * H:2 * H])
        g = jnp.tanh(gates[:, 2 * H:3 * H])
        o = jax.nn.sigmoid(gates[:, 3 * H:4 * H])
        c = f * c + i * g
        h = o * jnp.tanh(c)
        return (h, c), h

    h0 = jnp.zeros((B, H), jnp.float32)
    c0 = jnp.zeros((B, H), jnp.float32)
    _, hs = lax.scan(step, (h0, c0), jnp.transpose(x, (1, 0, 2)))
    hs = jnp.transpose(hs, (1, 0, 2))                               # (B, T, H)
    return hs @ raw["w_fc"].T + raw["b_fc"][None, :]


if __name__ == "__main__":
    # Small shapes consistent with the module's forward; 4H = 128 = one lane
    # width and B*T*C = 128 = one lane-dense output slab.
    VOCAB, NUM_CLASSES, HIDDEN, EMB = 50, 8, 32, 32
    B, T = 2, 8

    key = jax.random.PRNGKey(0)
    k_params, k_tok = jax.random.split(key)
    raw, kparams = init_params(k_params, VOCAB, NUM_CLASSES, HIDDEN, EMB)
    tokens = jax.random.randint(k_tok, (B, T), 0, VOCAB, dtype=jnp.int32)

    logits = jax.block_until_ready(ner_forward(tokens, kparams))
    ref = jax.block_until_ready(ner_forward_ref(tokens, raw))

    assert logits.shape == (B, T, NUM_CLASSES)
    # bf16 MXU operands on the 8-step recurrence (perf-review change) cost a
    # little accuracy vs. the f32 reference; 2e-2 still catches layout/gate bugs.
    assert jnp.allclose(logits, ref, rtol=2e-2, atol=2e-2)

    print("KERNEL_OK")
</pallas_src>

<mosaic_0001>
module attributes {stable_mosaic.version = 11 : i64} {
  func.func @ner_lstm_fc_kernel(%arg0: i32, %arg1: memref<2x8xi32, #tpu.memory_space<smem>>, %arg2: memref<50x1x128xf32, #tpu.memory_space<vmem>>, %arg3: memref<32x128xf32, #tpu.memory_space<vmem>>, %arg4: memref<32x128xf32, #tpu.memory_space<vmem>>, %arg5: memref<1x128xf32, #tpu.memory_space<vmem>>, %arg6: memref<1x128xf32, #tpu.memory_space<vmem>>) attributes {dimension_semantics = [#tpu.dimension_semantics<arbitrary>], iteration_bounds = array<i64: 1>, scalar_prefetch = 1 : i64, scratch_operands = 0 : i64, tpu.core_type = #tpu.core_type<tc>, window_params = [{pipeline_mode = #tpu.pipeline_mode<synchronous>, transform_indices = @transform_0, window_bounds = array<i64: 50, 1, 128>}, {pipeline_mode = #tpu.pipeline_mode<synchronous>, transform_indices = @transform_1, window_bounds = array<i64: 32, 128>}, {pipeline_mode = #tpu.pipeline_mode<synchronous>, transform_indices = @transform_2, window_bounds = array<i64: 32, 128>}, {pipeline_mode = #tpu.pipeline_mode<synchronous>, transform_indices = @transform_3, window_bounds = array<i64: 1, 128>}, {pipeline_mode = #tpu.pipeline_mode<synchronous>, transform_indices = @transform_4, window_bounds = array<i64: 1, 128>}]} {
    %c0 = arith.constant 0 : index
    %c0_0 = arith.constant 0 : index
    %0 = memref.load %arg1[%c0, %c0_0] : memref<2x8xi32, #tpu.memory_space<smem>>
    %c0_i32 = arith.constant 0 : i32
    %c49_i32 = arith.constant 49 : i32
    %1 = arith.maxsi %c0_i32, %0 : i32
    %2 = arith.minsi %c49_i32, %1 : i32
    %3 = arith.index_cast %2 : i32 to index
    %c0_1 = arith.constant 0 : index
    %c0_2 = arith.constant 0 : index
    %4 = vector.load %arg2[%3, %c0_1, %c0_2] : memref<50x1x128xf32, #tpu.memory_space<vmem>>, vector<1x1x128xf32>
    %5 = vector.shape_cast %4 : vector<1x1x128xf32> to vector<1x128xf32>
    %c1 = arith.constant 1 : index
    %c0_3 = arith.constant 0 : index
    %6 = memref.load %arg1[%c1, %c0_3] : memref<2x8xi32, #tpu.memory_space<smem>>
    %c0_i32_4 = arith.constant 0 : i32
    %c49_i32_5 = arith.constant 49 : i32
    %7 = arith.maxsi %c0_i32_4, %6 : i32
    %8 = arith.minsi %c49_i32_5, %7 : i32
    %9 = arith.index_cast %8 : i32 to index
    %c0_6 = arith.constant 0 : index
    %c0_7 = arith.constant 0 : index
    %10 = vector.load %arg2[%9, %c0_6, %c0_7] : memref<50x1x128xf32, #tpu.memory_space<vmem>>, vector<1x1x128xf32>
    %11 = vector.shape_cast %10 : vector<1x1x128xf32> to vector<1x128xf32>
    %c0_8 = arith.constant 0 : index
    %c1_9 = arith.constant 1 : index
    %12 = memref.load %arg1[%c0_8, %c1_9] : memref<2x8xi32, #tpu.memory_space<smem>>
    %c0_i32_10 = arith.constant 0 : i32
    %c49_i32_11 = arith.constant 49 : i32
    %13 = arith.maxsi %c0_i32_10, %12 : i32
    %14 = arith.minsi %c49_i32_11, %13 : i32
    %15 = arith.index_cast %14 : i32 to index
    %c0_12 = arith.constant 0 : index
    %c0_13 = arith.constant 0 : index
    %16 = vector.load %arg2[%15, %c0_12, %c0_13] : memref<50x1x128xf32, #tpu.memory_space<vmem>>, vector<1x1x128xf32>
    %17 = vector.shape_cast %16 : vector<1x1x128xf32> to vector<1x128xf32>
    %c1_14 = arith.constant 1 : index
    %c1_15 = arith.constant 1 : index
    %18 = memref.load %arg1[%c1_14, %c1_15] : memref<2x8xi32, #tpu.memory_space<smem>>
    %c0_i32_16 = arith.constant 0 : i32
    %c49_i32_17 = arith.constant 49 : i32
    %19 = arith.maxsi %c0_i32_16, %18 : i32
    %20 = arith.minsi %c49_i32_17, %19 : i32
    %21 = arith.index_cast %20 : i32 to index
    %c0_18 = arith.constant 0 : index
    %c0_19 = arith.constant 0 : index
    %22 = vector.load %arg2[%21, %c0_18, %c0_19] : memref<50x1x128xf32, #tpu.memory_space<vmem>>, vector<1x1x128xf32>
    %23 = vector.shape_cast %22 : vector<1x1x128xf32> to vector<1x128xf32>
    %c0_20 = arith.constant 0 : index
    %c2 = arith.constant 2 : index
    %24 = memref.load %arg1[%c0_20, %c2] : memref<2x8xi32, #tpu.memory_space<smem>>
    %c0_i32_21 = arith.constant 0 : i32
    %c49_i32_22 = arith.constant 49 : i32
    %25 = arith.maxsi %c0_i32_21, %24 : i32
    %26 = arith.minsi %c49_i32_22, %25 : i32
    %27 = arith.index_cast %26 : i32 to index
    %c0_23 = arith.constant 0 : index
    %c0_24 = arith.constant 0 : index
    %28 = vector.load %arg2[%27, %c0_23, %c0_24] : memref<50x1x128xf32, #tpu.memory_space<vmem>>, vector<1x1x128xf32>
    %29 = vector.shape_cast %28 : vector<1x1x128xf32> to vector<1x128xf32>
    %c1_25 = arith.constant 1 : index
    %c2_26 = arith.constant 2 : index
    %30 = memref.load %arg1[%c1_25, %c2_26] : memref<2x8xi32, #tpu.memory_space<smem>>
    %c0_i32_27 = arith.constant 0 : i32
    %c49_i32_28 = arith.constant 49 : i32
    %31 = arith.maxsi %c0_i32_27, %30 : i32
    %32 = arith.minsi %c49_i32_28, %31 : i32
    %33 = arith.index_cast %32 : i32 to index
    %c0_29 = arith.constant 0 : index
    %c0_30 = arith.constant 0 : index
    %34 = vector.load %arg2[%33, %c0_29, %c0_30] : memref<50x1x128xf32, #tpu.memory_space<vmem>>, vector<1x1x128xf32>
    %35 = vector.shape_cast %34 : vector<1x1x128xf32> to vector<1x128xf32>
    %c0_31 = arith.constant 0 : index
    %c3 = arith.constant 3 : index
    %36 = memref.load %arg1[%c0_31, %c3] : memref<2x8xi32, #tpu.memory_space<smem>>
    %c0_i32_32 = arith.constant 0 : i32
    %c49_i32_33 = arith.constant 49 : i32
    %37 = arith.maxsi %c0_i32_32, %36 : i32
    %38 = arith.minsi %c49_i32_33, %37 : i32
    %39 = arith.index_cast %38 : i32 to index
    %c0_34 = arith.constant 0 : index
    %c0_35 = arith.constant 0 : index
    %40 = vector.load %arg2[%39, %c0_34, %c0_35] : memref<50x1x128xf32, #tpu.memory_space<vmem>>, vector<1x1x128xf32>
    %41 = vector.shape_cast %40 : vector<1x1x128xf32> to vector<1x128xf32>
    %c1_36 = arith.constant 1 : index
    %c3_37 = arith.constant 3 : index
    %42 = memref.load %arg1[%c1_36, %c3_37] : memref<2x8xi32, #tpu.memory_space<smem>>
    %c0_i32_38 = arith.constant 0 : i32
    %c49_i32_39 = arith.constant 49 : i32
    %43 = arith.maxsi %c0_i32_38, %42 : i32
    %44 = arith.minsi %c49_i32_39, %43 : i32
    %45 = arith.index_cast %44 : i32 to index
    %c0_40 = arith.constant 0 : index
    %c0_41 = arith.constant 0 : index
    %46 = vector.load %arg2[%45, %c0_40, %c0_41] : memref<50x1x128xf32, #tpu.memory_space<vmem>>, vector<1x1x128xf32>
    %47 = vector.shape_cast %46 : vector<1x1x128xf32> to vector<1x128xf32>
    %c0_42 = arith.constant 0 : index
    %c4 = arith.constant 4 : index
    %48 = memref.load %arg1[%c0_42, %c4] : memref<2x8xi32, #tpu.memory_space<smem>>
    %c0_i32_43 = arith.constant 0 : i32
    %c49_i32_44 = arith.constant 49 : i32
    %49 = arith.maxsi %c0_i32_43, %48 : i32
    %50 = arith.minsi %c49_i32_44, %49 : i32
    %51 = arith.index_cast %50 : i32 to index
    %c0_45 = arith.constant 0 : index
    %c0_46 = arith.constant 0 : index
    %52 = vector.load %arg2[%51, %c0_45, %c0_46] : memref<50x1x128xf32, #tpu.memory_space<vmem>>, vector<1x1x128xf32>
    %53 = vector.shape_cast %52 : vector<1x1x128xf32> to vector<1x128xf32>
    %c1_47 = arith.constant 1 : index
    %c4_48 = arith.constant 4 : index
    %54 = memref.load %arg1[%c1_47, %c4_48] : memref<2x8xi32, #tpu.memory_space<smem>>
    %c0_i32_49 = arith.constant 0 : i32
    %c49_i32_50 = arith.constant 49 : i32
    %55 = arith.maxsi %c0_i32_49, %54 : i32
    %56 = arith.minsi %c49_i32_50, %55 : i32
    %57 = arith.index_cast %56 : i32 to index
    %c0_51 = arith.constant 0 : index
    %c0_52 = arith.constant 0 : index
    %58 = vector.load %arg2[%57, %c0_51, %c0_52] : memref<50x1x128xf32, #tpu.memory_space<vmem>>, vector<1x1x128xf32>
    %59 = vector.shape_cast %58 : vector<1x1x128xf32> to vector<1x128xf32>
    %c0_53 = arith.constant 0 : index
    %c5 = arith.constant 5 : index
    %60 = memref.load %arg1[%c0_53, %c5] : memref<2x8xi32, #tpu.memory_space<smem>>
    %c0_i32_54 = arith.constant 0 : i32
    %c49_i32_55 = arith.constant 49 : i32
    %61 = arith.maxsi %c0_i32_54, %60 : i32
    %62 = arith.minsi %c49_i32_55, %61 : i32
    %63 = arith.index_cast %62 : i32 to index
    %c0_56 = arith.constant 0 : index
    %c0_57 = arith.constant 0 : index
    %64 = vector.load %arg2[%63, %c0_56, %c0_57] : memref<50x1x128xf32, #tpu.memory_space<vmem>>, vector<1x1x128xf32>
    %65 = vector.shape_cast %64 : vector<1x1x128xf32> to vector<1x128xf32>
    %c1_58 = arith.constant 1 : index
    %c5_59 = arith.constant 5 : index
    %66 = memref.load %arg1[%c1_58, %c5_59] : memref<2x8xi32, #tpu.memory_space<smem>>
    %c0_i32_60 = arith.constant 0 : i32
    %c49_i32_61 = arith.constant 49 : i32
    %67 = arith.maxsi %c0_i32_60, %66 : i32
    %68 = arith.minsi %c49_i32_61, %67 : i32
    %69 = arith.index_cast %68 : i32 to index
    %c0_62 = arith.constant 0 : index
    %c0_63 = arith.constant 0 : index
    %70 = vector.load %arg2[%69, %c0_62, %c0_63] : memref<50x1x128xf32, #tpu.memory_space<vmem>>, vector<1x1x128xf32>
    %71 = vector.shape_cast %70 : vector<1x1x128xf32> to vector<1x128xf32>
    %c0_64 = arith.constant 0 : index
    %c6 = arith.constant 6 : index
    %72 = memref.load %arg1[%c0_64, %c6] : memref<2x8xi32, #tpu.memory_space<smem>>
    %c0_i32_65 = arith.constant 0 : i32
    %c49_i32_66 = arith.constant 49 : i32
    %73 = arith.maxsi %c0_i32_65, %72 : i32
    %74 = arith.minsi %c49_i32_66, %73 : i32
    %75 = arith.index_cast %74 : i32 to index
    %c0_67 = arith.constant 0 : index
    %c0_68 = arith.constant 0 : index
    %76 = vector.load %arg2[%75, %c0_67, %c0_68] : memref<50x1x128xf32, #tpu.memory_space<vmem>>, vector<1x1x128xf32>
    %77 = vector.shape_cast %76 : vector<1x1x128xf32> to vector<1x128xf32>
    %c1_69 = arith.constant 1 : index
    %c6_70 = arith.constant 6 : index
    %78 = memref.load %arg1[%c1_69, %c6_70] : memref<2x8xi32, #tpu.memory_space<smem>>
    %c0_i32_71 = arith.constant 0 : i32
    %c49_i32_72 = arith.constant 49 : i32
    %79 = arith.maxsi %c0_i32_71, %78 : i32
    %80 = arith.minsi %c49_i32_72, %79 : i32
    %81 = arith.index_cast %80 : i32 to index
    %c0_73 = arith.constant 0 : index
    %c0_74 = arith.constant 0 : index
    %82 = vector.load %arg2[%81, %c0_73, %c0_74] : memref<50x1x128xf32, #tpu.memory_space<vmem>>, vector<1x1x128xf32>
    %83 = vector.shape_cast %82 : vector<1x1x128xf32> to vector<1x128xf32>
    %c0_75 = arith.constant 0 : index
    %c7 = arith.constant 7 : index
    %84 = memref.load %arg1[%c0_75, %c7] : memref<2x8xi32, #tpu.memory_space<smem>>
    %c0_i32_76 = arith.constant 0 : i32
    %c49_i32_77 = arith.constant 49 : i32
    %85 = arith.maxsi %c0_i32_76, %84 : i32
    %86 = arith.minsi %c49_i32_77, %85 : i32
    %87 = arith.index_cast %86 : i32 to index
    %c0_78 = arith.constant 0 : index
    %c0_79 = arith.constant 0 : index
    %88 = vector.load %arg2[%87, %c0_78, %c0_79] : memref<50x1x128xf32, #tpu.memory_space<vmem>>, vector<1x1x128xf32>
    %89 = vector.shape_cast %88 : vector<1x1x128xf32> to vector<1x128xf32>
    %c1_80 = arith.constant 1 : index
    %c7_81 = arith.constant 7 : index
    %90 = memref.load %arg1[%c1_80, %c7_81] : memref<2x8xi32, #tpu.memory_space<smem>>
    %c0_i32_82 = arith.constant 0 : i32
    %c49_i32_83 = arith.constant 49 : i32
    %91 = arith.maxsi %c0_i32_82, %90 : i32
    %92 = arith.minsi %c49_i32_83, %91 : i32
    %93 = arith.index_cast %92 : i32 to index
    %c0_84 = arith.constant 0 : index
    %c0_85 = arith.constant 0 : index
    %94 = vector.load %arg2[%93, %c0_84, %c0_85] : memref<50x1x128xf32, #tpu.memory_space<vmem>>, vector<1x1x128xf32>
    %95 = vector.shape_cast %94 : vector<1x1x128xf32> to vector<1x128xf32>
    %96 = tpu.concatenate %5, %11, %17, %23, %29, %35, %41, %47, %53, %59, %65, %71, %77, %83, %89, %95 in 0 : vector<1x128xf32>, vector<1x128xf32>, vector<1x128xf32>, vector<1x128xf32>, vector<1x128xf32>, vector<1x128xf32>, vector<1x128xf32>, vector<1x128xf32>, vector<1x128xf32>, vector<1x128xf32>, vector<1x128xf32>, vector<1x128xf32>, vector<1x128xf32>, vector<1x128xf32>, vector<1x128xf32>, vector<1x128xf32> -> vector<16x128xf32>
    %c0_86 = arith.constant 0 : index
    %c0_87 = arith.constant 0 : index
    %97 = vector.load %arg3[%c0_86, %c0_87] : memref<32x128xf32, #tpu.memory_space<vmem>>, vector<32x128xf32>
    %98 = arith.truncf %97 : vector<32x128xf32> to vector<32x128xbf16>
    %cst = arith.constant 0.000000e+00 : f32
    %99 = vector.broadcast %cst : f32 to vector<2x32xf32>
    %cst_88 = arith.constant 0.000000e+00 : f32
    %100 = vector.broadcast %cst_88 : f32 to vector<2x32xf32>
    %101 = vector.extract_strided_slice %96 {offsets = [0, 0], sizes = [2, 128], strides = [1, 1]} : vector<16x128xf32> to vector<2x128xf32>
    %102 = arith.truncf %99 : vector<2x32xf32> to vector<2x32xbf16>
    %cst_89 = arith.constant dense<0.000000e+00> : vector<2x128xf32>
    %103 = tpu.matmul %102, %98, %cst_89 {dimension_numbers = #tpu.dot_dimension_numbers<[1], [0], [0], [1], [0, 0, 1, 1], [], []>} : vector<2x32xbf16>, vector<32x128xbf16>, vector<2x128xf32> -> vector<2x128xf32>
    %104 = arith.addf %101, %103 : vector<2x128xf32>
    %105 = arith.negf %104 : vector<2x128xf32>
    %106 = math.exp %105 : vector<2x128xf32>
    %cst_90 = arith.constant 1.000000e+00 : f32
    %107 = vector.broadcast %cst_90 : f32 to vector<2x128xf32>
    %108 = arith.addf %107, %106 : vector<2x128xf32>
    %109 = arith.divf %107, %108 : vector<2x128xf32>
    %110 = math.tanh %104 : vector<2x128xf32>
    %111 = vector.extract_strided_slice %109 {offsets = [0, 0], sizes = [2, 32], strides = [1, 1]} : vector<2x128xf32> to vector<2x32xf32>
    %112 = vector.extract_strided_slice %109 {offsets = [0, 32], sizes = [2, 32], strides = [1, 1]} : vector<2x128xf32> to vector<2x32xf32>
    %113 = vector.extract_strided_slice %110 {offsets = [0, 64], sizes = [2, 32], strides = [1, 1]} : vector<2x128xf32> to vector<2x32xf32>
    %114 = vector.extract_strided_slice %109 {offsets = [0, 96], sizes = [2, 32], strides = [1, 1]} : vector<2x128xf32> to vector<2x32xf32>
    %115 = arith.mulf %112, %100 : vector<2x32xf32>
    %116 = arith.mulf %111, %113 : vector<2x32xf32>
    %117 = arith.addf %115, %116 : vector<2x32xf32>
    %118 = math.tanh %117 : vector<2x32xf32>
    %119 = arith.mulf %114, %118 : vector<2x32xf32>
    %120 = vector.extract_strided_slice %96 {offsets = [2, 0], sizes = [2, 128], strides = [1, 1]} : vector<16x128xf32> to vector<2x128xf32>
    %121 = arith.truncf %119 : vector<2x32xf32> to vector<2x32xbf16>
    %cst_91 = arith.constant dense<0.000000e+00> : vector<2x128xf32>
    %122 = tpu.matmul %121, %98, %cst_91 {dimension_numbers = #tpu.dot_dimension_numbers<[1], [0], [0], [1], [0, 0, 1, 1], [], []>} : vector<2x32xbf16>, vector<32x128xbf16>, vector<2x128xf32> -> vector<2x128xf32>
    %123 = arith.addf %120, %122 : vector<2x128xf32>
    %124 = arith.negf %123 : vector<2x128xf32>
    %125 = math.exp %124 : vector<2x128xf32>
    %cst_92 = arith.constant 1.000000e+00 : f32
    %126 = vector.broadcast %cst_92 : f32 to vector<2x128xf32>
    %127 = arith.addf %126, %125 : vector<2x128xf32>
    %128 = arith.divf %126, %127 : vector<2x128xf32>
    %129 = math.tanh %123 : vector<2x128xf32>
    %130 = vector.extract_strided_slice %128 {offsets = [0, 0], sizes = [2, 32], strides = [1, 1]} : vector<2x128xf32> to vector<2x32xf32>
    %131 = vector.extract_strided_slice %128 {offsets = [0, 32], sizes = [2, 32], strides = [1, 1]} : vector<2x128xf32> to vector<2x32xf32>
    %132 = vector.extract_strided_slice %129 {offsets = [0, 64], sizes = [2, 32], strides = [1, 1]} : vector<2x128xf32> to vector<2x32xf32>
    %133 = vector.extract_strided_slice %128 {offsets = [0, 96], sizes = [2, 32], strides = [1, 1]} : vector<2x128xf32> to vector<2x32xf32>
    %134 = arith.mulf %131, %117 : vector<2x32xf32>
    %135 = arith.mulf %130, %132 : vector<2x32xf32>
    %136 = arith.addf %134, %135 : vector<2x32xf32>
    %137 = math.tanh %136 : vector<2x32xf32>
    %138 = arith.mulf %133, %137 : vector<2x32xf32>
    %139 = vector.extract_strided_slice %96 {offsets = [4, 0], sizes = [2, 128], strides = [1, 1]} : vector<16x128xf32> to vector<2x128xf32>
    %140 = arith.truncf %138 : vector<2x32xf32> to vector<2x32xbf16>
    %cst_93 = arith.constant dense<0.000000e+00> : vector<2x128xf32>
    %141 = tpu.matmul %140, %98, %cst_93 {dimension_numbers = #tpu.dot_dimension_numbers<[1], [0], [0], [1], [0, 0, 1, 1], [], []>} : vector<2x32xbf16>, vector<32x128xbf16>, vector<2x128xf32> -> vector<2x128xf32>
    %142 = arith.addf %139, %141 : vector<2x128xf32>
    %143 = arith.negf %142 : vector<2x128xf32>
    %144 = math.exp %143 : vector<2x128xf32>
    %cst_94 = arith.constant 1.000000e+00 : f32
    %145 = vector.broadcast %cst_94 : f32 to vector<2x128xf32>
    %146 = arith.addf %145, %144 : vector<2x128xf32>
    %147 = arith.divf %145, %146 : vector<2x128xf32>
    %148 = math.tanh %142 : vector<2x128xf32>
    %149 = vector.extract_strided_slice %147 {offsets = [0, 0], sizes = [2, 32], strides = [1, 1]} : vector<2x128xf32> to vector<2x32xf32>
    %150 = vector.extract_strided_slice %147 {offsets = [0, 32], sizes = [2, 32], strides = [1, 1]} : vector<2x128xf32> to vector<2x32xf32>
    %151 = vector.extract_strided_slice %148 {offsets = [0, 64], sizes = [2, 32], strides = [1, 1]} : vector<2x128xf32> to vector<2x32xf32>
    %152 = vector.extract_strided_slice %147 {offsets = [0, 96], sizes = [2, 32], strides = [1, 1]} : vector<2x128xf32> to vector<2x32xf32>
    %153 = arith.mulf %150, %136 : vector<2x32xf32>
    %154 = arith.mulf %149, %151 : vector<2x32xf32>
    %155 = arith.addf %153, %154 : vector<2x32xf32>
    %156 = math.tanh %155 : vector<2x32xf32>
    %157 = arith.mulf %152, %156 : vector<2x32xf32>
    %158 = vector.extract_strided_slice %96 {offsets = [6, 0], sizes = [2, 128], strides = [1, 1]} : vector<16x128xf32> to vector<2x128xf32>
    %159 = arith.truncf %157 : vector<2x32xf32> to vector<2x32xbf16>
    %cst_95 = arith.constant dense<0.000000e+00> : vector<2x128xf32>
    %160 = tpu.matmul %159, %98, %cst_95 {dimension_numbers = #tpu.dot_dimension_numbers<[1], [0], [0], [1], [0, 0, 1, 1], [], []>} : vector<2x32xbf16>, vector<32x128xbf16>, vector<2x128xf32> -> vector<2x128xf32>
    %161 = arith.addf %158, %160 : vector<2x128xf32>
    %162 = arith.negf %161 : vector<2x128xf32>
    %163 = math.exp %162 : vector<2x128xf32>
    %cst_96 = arith.constant 1.000000e+00 : f32
    %164 = vector.broadcast %cst_96 : f32 to vector<2x128xf32>
    %165 = arith.addf %164, %163 : vector<2x128xf32>
    %166 = arith.divf %164, %165 : vector<2x128xf32>
    %167 = math.tanh %161 : vector<2x128xf32>
    %168 = vector.extract_strided_slice %166 {offsets = [0, 0], sizes = [2, 32], strides = [1, 1]} : vector<2x128xf32> to vector<2x32xf32>
    %169 = vector.extract_strided_slice %166 {offsets = [0, 32], sizes = [2, 32], strides = [1, 1]} : vector<2x128xf32> to vector<2x32xf32>
    %170 = vector.extract_strided_slice %167 {offsets = [0, 64], sizes = [2, 32], strides = [1, 1]} : vector<2x128xf32> to vector<2x32xf32>
    %171 = vector.extract_strided_slice %166 {offsets = [0, 96], sizes = [2, 32], strides = [1, 1]} : vector<2x128xf32> to vector<2x32xf32>
    %172 = arith.mulf %169, %155 : vector<2x32xf32>
    %173 = arith.mulf %168, %170 : vector<2x32xf32>
    %174 = arith.addf %172, %173 : vector<2x32xf32>
    %175 = math.tanh %174 : vector<2x32xf32>
    %176 = arith.mulf %171, %175 : vector<2x32xf32>
    %177 = vector.extract_strided_slice %96 {offsets = [8, 0], sizes = [2, 128], strides = [1, 1]} : vector<16x128xf32> to vector<2x128xf32>
    %178 = arith.truncf %176 : vector<2x32xf32> to vector<2x32xbf16>
    %cst_97 = arith.constant dense<0.000000e+00> : vector<2x128xf32>
    %179 = tpu.matmul %178, %98, %cst_97 {dimension_numbers = #tpu.dot_dimension_numbers<[1], [0], [0], [1], [0, 0, 1, 1], [], []>} : vector<2x32xbf16>, vector<32x128xbf16>, vector<2x128xf32> -> vector<2x128xf32>
    %180 = arith.addf %177, %179 : vector<2x128xf32>
    %181 = arith.negf %180 : vector<2x128xf32>
    %182 = math.exp %181 : vector<2x128xf32>
    %cst_98 = arith.constant 1.000000e+00 : f32
    %183 = vector.broadcast %cst_98 : f32 to vector<2x128xf32>
    %184 = arith.addf %183, %182 : vector<2x128xf32>
    %185 = arith.divf %183, %184 : vector<2x128xf32>
    %186 = math.tanh %180 : vector<2x128xf32>
    %187 = vector.extract_strided_slice %185 {offsets = [0, 0], sizes = [2, 32], strides = [1, 1]} : vector<2x128xf32> to vector<2x32xf32>
    %188 = vector.extract_strided_slice %185 {offsets = [0, 32], sizes = [2, 32], strides = [1, 1]} : vector<2x128xf32> to vector<2x32xf32>
    %189 = vector.extract_strided_slice %186 {offsets = [0, 64], sizes = [2, 32], strides = [1, 1]} : vector<2x128xf32> to vector<2x32xf32>
    %190 = vector.extract_strided_slice %185 {offsets = [0, 96], sizes = [2, 32], strides = [1, 1]} : vector<2x128xf32> to vector<2x32xf32>
    %191 = arith.mulf %188, %174 : vector<2x32xf32>
    %192 = arith.mulf %187, %189 : vector<2x32xf32>
    %193 = arith.addf %191, %192 : vector<2x32xf32>
    %194 = math.tanh %193 : vector<2x32xf32>
    %195 = arith.mulf %190, %194 : vector<2x32xf32>
    %196 = vector.extract_strided_slice %96 {offsets = [10, 0], sizes = [2, 128], strides = [1, 1]} : vector<16x128xf32> to vector<2x128xf32>
    %197 = arith.truncf %195 : vector<2x32xf32> to vector<2x32xbf16>
    %cst_99 = arith.constant dense<0.000000e+00> : vector<2x128xf32>
    %198 = tpu.matmul %197, %98, %cst_99 {dimension_numbers = #tpu.dot_dimension_numbers<[1], [0], [0], [1], [0, 0, 1, 1], [], []>} : vector<2x32xbf16>, vector<32x128xbf16>, vector<2x128xf32> -> vector<2x128xf32>
    %199 = arith.addf %196, %198 : vector<2x128xf32>
    %200 = arith.negf %199 : vector<2x128xf32>
    %201 = math.exp %200 : vector<2x128xf32>
    %cst_100 = arith.constant 1.000000e+00 : f32
    %202 = vector.broadcast %cst_100 : f32 to vector<2x128xf32>
    %203 = arith.addf %202, %201 : vector<2x128xf32>
    %204 = arith.divf %202, %203 : vector<2x128xf32>
    %205 = math.tanh %199 : vector<2x128xf32>
    %206 = vector.extract_strided_slice %204 {offsets = [0, 0], sizes = [2, 32], strides = [1, 1]} : vector<2x128xf32> to vector<2x32xf32>
    %207 = vector.extract_strided_slice %204 {offsets = [0, 32], sizes = [2, 32], strides = [1, 1]} : vector<2x128xf32> to vector<2x32xf32>
    %208 = vector.extract_strided_slice %205 {offsets = [0, 64], sizes = [2, 32], strides = [1, 1]} : vector<2x128xf32> to vector<2x32xf32>
    %209 = vector.extract_strided_slice %204 {offsets = [0, 96], sizes = [2, 32], strides = [1, 1]} : vector<2x128xf32> to vector<2x32xf32>
    %210 = arith.mulf %207, %193 : vector<2x32xf32>
    %211 = arith.mulf %206, %208 : vector<2x32xf32>
    %212 = arith.addf %210, %211 : vector<2x32xf32>
    %213 = math.tanh %212 : vector<2x32xf32>
    %214 = arith.mulf %209, %213 : vector<2x32xf32>
    %215 = vector.extract_strided_slice %96 {offsets = [12, 0], sizes = [2, 128], strides = [1, 1]} : vector<16x128xf32> to vector<2x128xf32>
    %216 = arith.truncf %214 : vector<2x32xf32> to vector<2x32xbf16>
    %cst_101 = arith.constant dense<0.000000e+00> : vector<2x128xf32>
    %217 = tpu.matmul %216, %98, %cst_101 {dimension_numbers = #tpu.dot_dimension_numbers<[1], [0], [0], [1], [0, 0, 1, 1], [], []>} : vector<2x32xbf16>, vector<32x128xbf16>, vector<2x128xf32> -> vector<2x128xf32>
    %218 = arith.addf %215, %217 : vector<2x128xf32>
    %219 = arith.negf %218 : vector<2x128xf32>
    %220 = math.exp %219 : vector<2x128xf32>
    %cst_102 = arith.constant 1.000000e+00 : f32
    %221 = vector.broadcast %cst_102 : f32 to vector<2x128xf32>
    %222 = arith.addf %221, %220 : vector<2x128xf32>
    %223 = arith.divf %221, %222 : vector<2x128xf32>
    %224 = math.tanh %218 : vector<2x128xf32>
    %225 = vector.extract_strided_slice %223 {offsets = [0, 0], sizes = [2, 32], strides = [1, 1]} : vector<2x128xf32> to vector<2x32xf32>
    %226 = vector.extract_strided_slice %223 {offsets = [0, 32], sizes = [2, 32], strides = [1, 1]} : vector<2x128xf32> to vector<2x32xf32>
    %227 = vector.extract_strided_slice %224 {offsets = [0, 64], sizes = [2, 32], strides = [1, 1]} : vector<2x128xf32> to vector<2x32xf32>
    %228 = vector.extract_strided_slice %223 {offsets = [0, 96], sizes = [2, 32], strides = [1, 1]} : vector<2x128xf32> to vector<2x32xf32>
    %229 = arith.mulf %226, %212 : vector<2x32xf32>
    %230 = arith.mulf %225, %227 : vector<2x32xf32>
    %231 = arith.addf %229, %230 : vector<2x32xf32>
    %232 = math.tanh %231 : vector<2x32xf32>
    %233 = arith.mulf %228, %232 : vector<2x32xf32>
    %234 = vector.extract_strided_slice %96 {offsets = [14, 0], sizes = [2, 128], strides = [1, 1]} : vector<16x128xf32> to vector<2x128xf32>
    %235 = arith.truncf %233 : vector<2x32xf32> to vector<2x32xbf16>
    %cst_103 = arith.constant dense<0.000000e+00> : vector<2x128xf32>
    %236 = tpu.matmul %235, %98, %cst_103 {dimension_numbers = #tpu.dot_dimension_numbers<[1], [0], [0], [1], [0, 0, 1, 1], [], []>} : vector<2x32xbf16>, vector<32x128xbf16>, vector<2x128xf32> -> vector<2x128xf32>
    %237 = arith.addf %234, %236 : vector<2x128xf32>
    %238 = arith.negf %237 : vector<2x128xf32>
    %239 = math.exp %238 : vector<2x128xf32>
    %cst_104 = arith.constant 1.000000e+00 : f32
    %240 = vector.broadcast %cst_104 : f32 to vector<2x128xf32>
    %241 = arith.addf %240, %239 : vector<2x128xf32>
    %242 = arith.divf %240, %241 : vector<2x128xf32>
    %243 = math.tanh %237 : vector<2x128xf32>
    %244 = vector.extract_strided_slice %242 {offsets = [0, 0], sizes = [2, 32], strides = [1, 1]} : vector<2x128xf32> to vector<2x32xf32>
    %245 = vector.extract_strided_slice %242 {offsets = [0, 32], sizes = [2, 32], strides = [1, 1]} : vector<2x128xf32> to vector<2x32xf32>
    %246 = vector.extract_strided_slice %243 {offsets = [0, 64], sizes = [2, 32], strides = [1, 1]} : vector<2x128xf32> to vector<2x32xf32>
    %247 = vector.extract_strided_slice %242 {offsets = [0, 96], sizes = [2, 32], strides = [1, 1]} : vector<2x128xf32> to vector<2x32xf32>
    %248 = arith.mulf %245, %231 : vector<2x32xf32>
    %249 = arith.mulf %244, %246 : vector<2x32xf32>
    %250 = arith.addf %248, %249 : vector<2x32xf32>
    %251 = math.tanh %250 : vector<2x32xf32>
    %252 = arith.mulf %247, %251 : vector<2x32xf32>
    %253 = tpu.concatenate %119, %138, %157, %176, %195, %214, %233, %252 in 0 : vector<2x32xf32>, vector<2x32xf32>, vector<2x32xf32>, vector<2x32xf32>, vector<2x32xf32>, vector<2x32xf32>, vector<2x32xf32>, vector<2x32xf32> -> vector<16x32xf32>
    %c0_105 = arith.constant 0 : index
    %c0_106 = arith.constant 0 : index
    %254 = vector.load %arg4[%c0_105, %c0_106] : memref<32x128xf32, #tpu.memory_space<vmem>>, vector<32x128xf32>
    %cst_107 = arith.constant dense<0.000000e+00> : vector<16x128xf32>
    %255 = tpu.matmul %253, %254, %cst_107 {dimension_numbers = #tpu.dot_dimension_numbers<[1], [0], [0], [1], [0, 0, 1, 1], [], []>} : vector<16x32xf32>, vector<32x128xf32>, vector<16x128xf32> -> vector<16x128xf32>
    %256 = tpu.iota {dimensions = array<i32: 1>} : vector<16x128xi32>
    %257 = tpu.iota {dimensions = array<i32: 0>} : vector<16x128xi32>
    %c8_i32 = arith.constant 8 : i32
    %258 = vector.broadcast %c8_i32 : i32 to vector<16x128xi32>
    %259 = arith.muli %257, %258 : vector<16x128xi32>
    %260 = arith.cmpi sge, %256, %259 : vector<16x128xi32>
    %c8_i32_108 = arith.constant 8 : i32
    %261 = vector.broadcast %c8_i32_108 : i32 to vector<16x128xi32>
    %262 = arith.addi %259, %261 : vector<16x128xi32>
    %263 = arith.cmpi slt, %256, %262 : vector<16x128xi32>
    %264 = arith.andi %260, %263 : vector<16x128xi1>
    %cst_109 = arith.constant 0.000000e+00 : f32
    %265 = vector.broadcast %cst_109 : f32 to vector<16x128xf32>
    %266 = arith.select %264, %255, %265 : vector<16x128xi1>, vector<16x128xf32>
    %cst_110 = arith.constant dense<0.000000e+00> : vector<128xf32>
    %267 = vector.multi_reduction <add>, %266, %cst_110 [0] : vector<16x128xf32> to vector<128xf32>
    %268 = vector.shape_cast %267 : vector<128xf32> to vector<1x128xf32>
    %c0_111 = arith.constant 0 : index
    %c0_112 = arith.constant 0 : index
    %269 = vector.load %arg5[%c0_111, %c0_112] : memref<1x128xf32, #tpu.memory_space<vmem>>, vector<1x128xf32>
    %270 = arith.addf %268, %269 : vector<1x128xf32>
    %c0_113 = arith.constant 0 : index
    %c0_114 = arith.constant 0 : index
    %271 = vector.load %arg6[%c0_113, %c0_114] : memref<1x128xf32, #tpu.memory_space<vmem>>, vector<1x128xf32>
    tpu.vector_store %arg6[%c0_113, %c0_114], %270 {strides = array<i32>} : memref<1x128xf32, #tpu.memory_space<vmem>>, vector<1x128xf32>,
    return
  }
  func.func @transform_0(%arg0: i32, %arg1: memref<2x8xi32, #tpu.memory_space<smem>>) -> (i32, i32, i32) {
    %c0_i32 = arith.constant 0 : i32
    %c0_i32_0 = arith.constant 0 : i32
    %c0_i32_1 = arith.constant 0 : i32
    %c0_i32_2 = arith.constant 0 : i32
    return %c0_i32, %c0_i32_0, %c0_i32_1 : i32, i32, i32
  }
  func.func @transform_1(%arg0: i32, %arg1: memref<2x8xi32, #tpu.memory_space<smem>>) -> (i32, i32) {
    %c0_i32 = arith.constant 0 : i32
    %c0_i32_0 = arith.constant 0 : i32
    %c0_i32_1 = arith.constant 0 : i32
    return %c0_i32, %c0_i32_0 : i32, i32
  }
  func.func @transform_2(%arg0: i32, %arg1: memref<2x8xi32, #tpu.memory_space<smem>>) -> (i32, i32) {
    %c0_i32 = arith.constant 0 : i32
    %c0_i32_0 = arith.constant 0 : i32
    %c0_i32_1 = arith.constant 0 : i32
    return %c0_i32, %c0_i32_0 : i32, i32
  }
  func.func @transform_3(%arg0: i32, %arg1: memref<2x8xi32, #tpu.memory_space<smem>>) -> (i32, i32) {
    %c0_i32 = arith.constant 0 : i32
    %c0_i32_0 = arith.constant 0 : i32
    %c0_i32_1 = arith.constant 0 : i32
    return %c0_i32, %c0_i32_0 : i32, i32
  }
  func.func @transform_4(%arg0: i32, %arg1: memref<2x8xi32, #tpu.memory_space<smem>>) -> (i32, i32) {
    %c0_i32 = arith.constant 0 : i32
    %c0_i32_0 = arith.constant 0 : i32
    %c0_i32_1 = arith.constant 0 : i32
    return %c0_i32, %c0_i32_0 : i32, i32
  }
}

</mosaic_0001>

<llo_original>
// kernel: tpu_custom_call.1
$region0: #{tpu_custom_call.1}
  #allocation0 [shape = 'u32[]', space=smem, size = 0x4, offset = 0x4, fixed_abs, tag = 'smem constant byte address 0x4 - core index']
  #allocation1 [shape = 'u32[144,128]{1,0:T(1,128)}', space=vmem, size = 0x12000, scoped, tag = 'internal scratch']
  #allocation2 [shape = 's32[1]{0}', space=sflag, size = 0x4, scoped, tag = 'scoped memory for tpu_custom_call.1']
  #allocation3 [shape = 'u8[1024]{0}', space=smem, size = 0x400, scoped, tag = 'prefetched SMEM operand 0']
  %s0 = inlined_call_operand.hbm [shape: s32[2,8], index: 0, kind: input, shape index: {}]
  %s1 = inlined_call_operand.hbm [shape: f32[50,1,128], index: 1, kind: input, shape index: {}]
  %s2 = inlined_call_operand.hbm [shape: f32[32,128], index: 2, kind: input, shape index: {}]
  %s3 = inlined_call_operand.hbm [shape: f32[32,128], index: 3, kind: input, shape index: {}]
  %s4 = inlined_call_operand.vmem [shape: f32[1,128], index: 4, kind: input, shape index: {}]
  %s5 = inlined_call_operand.hbm [shape: f32[1,128], index: 5, kind: output, shape index: {}]
  %s6 = sld [smem:[#allocation0]]
  $region38: #{tpu_custom_call.1} parent=0
    _
  %s8 = ssub.s32 1, %s6
  %s9 = scalar_select 0, %s8, %s6
  %11 = dma.hbm_to_smem %s0, 32, [#allocation3], [#allocation2]
  %12 = dma.done [#allocation2], 32
  %13 = sfence
  $region1: #{tpu_custom_call.1} parent=0
    #allocation4 [shape = 'u8[25600]{0}', space=vmem, size = 0x6400, scoped, tag = 'input window, operand 1, single buffered']
    #allocation5 [shape = 's32[1]{0}', space=sflag, size = 0x4, scoped, tag = 'scoped memory for tpu_custom_call.1']
    #allocation6 [shape = 's32[1]{0}', space=sflag, size = 0x4, scoped, tag = 'scoped memory for tpu_custom_call.1']
    #allocation7 [shape = 'u8[16384]{0}', space=vmem, size = 0x4000, scoped, tag = 'input window, operand 2, single buffered']
    #allocation8 [shape = 's32[1]{0}', space=sflag, size = 0x4, scoped, tag = 'scoped memory for tpu_custom_call.1']
    #allocation9 [shape = 'u8[16384]{0}', space=vmem, size = 0x4000, scoped, tag = 'input window, operand 3, single buffered']
    #allocation10 [shape = 'u8[512]{0}', space=vmem, size = 0x400, scoped, tag = 'output window, operand 0, single buffered']
    %14 = vsyncpa [#allocation5], 0
    %15 = vsyncpa [#allocation8], 0
    %16 = vsyncpa [#allocation6], 0
    // Predicated region
    $region2: #{tpu_custom_call.1} parent=1 // pred_check
      _
    $region3: #{tpu_custom_call.1} parent=1 // pred_check_branch
      %18 = sbr.rel (0) target = $region5
    $region4: #{tpu_custom_call.1} parent=1 // pred_region
      %s20 = ssub.s32 800, 800
      %21 = vsyncadd [#allocation5], %s20
      %s22 = sshll.u32 [#allocation4], 4
      %s23 = int_to_ptr.vmem [resolvable:$true] %s22
      %28 = dma.hbm_to_vmem [thread:$0]  %s1, 800, %s23, [#allocation5], 16, 16, 1
    $region5: #{tpu_custom_call.1} parent=1 // pred_fallthru
      _
    // Predicated region
    $region6: #{tpu_custom_call.1} parent=1 // pred_check
      _
    $region7: #{tpu_custom_call.1} parent=1 // pred_check_branch
      %30 = sbr.rel (0) target = $region9
    $region8: #{tpu_custom_call.1} parent=1 // pred_region
      %s32 = ssub.s32 512, 512
      %33 = vsyncadd [#allocation8], %s32
      %s34 = sshll.u32 [#allocation7], 4
      %s35 = int_to_ptr.vmem [resolvable:$true] %s34
      %40 = dma.hbm_to_vmem [thread:$0]  %s2, 512, %s35, [#allocation8], 128, 128, 8
    $region9: #{tpu_custom_call.1} parent=1 // pred_fallthru
      _
    // Predicated region
    $region10: #{tpu_custom_call.1} parent=1 // pred_check
      _
    $region11: #{tpu_custom_call.1} parent=1 // pred_check_branch
      %42 = sbr.rel (0) target = $region13
    $region12: #{tpu_custom_call.1} parent=1 // pred_region
      %s44 = ssub.s32 512, 512
      %45 = vsyncadd [#allocation8], %s44
      %s46 = sshll.u32 [#allocation9], 4
      %s47 = int_to_ptr.vmem [resolvable:$true] %s46
      %52 = dma.hbm_to_vmem [thread:$0]  %s3, 512, %s47, [#allocation8], 128, 128, 8
    $region13: #{tpu_custom_call.1} parent=1 // pred_fallthru
      _
    // Predicated region
    $region14: #{tpu_custom_call.1} parent=1 // pred_check
      _
    $region15: #{tpu_custom_call.1} parent=1 // pred_check_branch
      %54 = sbr.rel (0) target = $region17
    $region16: #{tpu_custom_call.1} parent=1 // pred_region
      _
    $region17: #{tpu_custom_call.1} parent=1 // pred_fallthru
      _
    // Predicated region
    $region18: #{tpu_custom_call.1} parent=1 // pred_check
      _
    $region19: #{tpu_custom_call.1} parent=1 // pred_check_branch
      %56 = sbr.rel (0) target = $region21
    $region20: #{tpu_custom_call.1} parent=1 // pred_region
      %57 = dma.done [#allocation5], 800
    $region21: #{tpu_custom_call.1} parent=1 // pred_fallthru
      _
    // Predicated region
    $region22: #{tpu_custom_call.1} parent=1 // pred_check
      _
    $region23: #{tpu_custom_call.1} parent=1 // pred_check_branch
      %59 = sbr.rel (0) target = $region25
    $region24: #{tpu_custom_call.1} parent=1 // pred_region
      %60 = dma.done [#allocation8], 512
    $region25: #{tpu_custom_call.1} parent=1 // pred_fallthru
      _
    // Predicated region
    $region26: #{tpu_custom_call.1} parent=1 // pred_check
      _
    $region27: #{tpu_custom_call.1} parent=1 // pred_check_branch
      %62 = sbr.rel (0) target = $region29
    $region28: #{tpu_custom_call.1} parent=1 // pred_region
      %63 = dma.done [#allocation8], 512
    $region29: #{tpu_custom_call.1} parent=1 // pred_fallthru
      _
    %s65 = sld [smem:[#allocation3]]
    %p66 = scmp.gt.s32.totalorder %s65, 0
    %s67 = scalar_select %p66, %s65, 0
    %p68 = scmp.lt.s32.totalorder %s67, 49
    %s69 = scalar_select %p68, %s67, 49
    %s70 = scalar_lea.vmem [#allocation4], %s69
    %v71 = vld [vmem:[%s70] sm:$0x1]
    %s72 = sld [smem:[#allocation3 + $0x80]]
    %p73 = scmp.gt.s32.totalorder %s72, 0
    %s74 = scalar_select %p73, %s72, 0
    %p75 = scmp.lt.s32.totalorder %s74, 49
    %s76 = scalar_select %p75, %s74, 49
    %s77 = scalar_lea.vmem [#allocation4], %s76
    %v78 = vld [vmem:[%s77] sm:$0x1]
    %s79 = sld [smem:[#allocation3 + $0x1]]
    %p80 = scmp.gt.s32.totalorder %s79, 0
    %s81 = scalar_select %p80, %s79, 0
    %p82 = scmp.lt.s32.totalorder %s81, 49
    %s83 = scalar_select %p82, %s81, 49
    %s84 = scalar_lea.vmem [#allocation4], %s83
    %v85 = vld [vmem:[%s84] sm:$0x1]
    %s86 = sld [smem:[#allocation3 + $0x81]]
    %p87 = scmp.gt.s32.totalorder %s86, 0
    %s88 = scalar_select %p87, %s86, 0
    %p89 = scmp.lt.s32.totalorder %s88, 49
    %s90 = scalar_select %p89, %s88, 49
    %s91 = scalar_lea.vmem [#allocation4], %s90
    %v92 = vld [vmem:[%s91] sm:$0x1]
    %s93 = sld [smem:[#allocation3 + $0x2]]
    %p94 = scmp.gt.s32.totalorder %s93, 0
    %s95 = scalar_select %p94, %s93, 0
    %p96 = scmp.lt.s32.totalorder %s95, 49
    %s97 = scalar_select %p96, %s95, 49
    %s98 = scalar_lea.vmem [#allocation4], %s97
    %v99 = vld [vmem:[%s98] sm:$0x1]
    %s100 = sld [smem:[#allocation3 + $0x82]]
    %p101 = scmp.gt.s32.totalorder %s100, 0
    %s102 = scalar_select %p101, %s100, 0
    %p103 = scmp.lt.s32.totalorder %s102, 49
    %s104 = scalar_select %p103, %s102, 49
    %s105 = scalar_lea.vmem [#allocation4], %s104
    %v106 = vld [vmem:[%s105] sm:$0x1]
    %s107 = sld [smem:[#allocation3 + $0x3]]
    %p108 = scmp.gt.s32.totalorder %s107, 0
    %s109 = scalar_select %p108, %s107, 0
    %p110 = scmp.lt.s32.totalorder %s109, 49
    %s111 = scalar_select %p110, %s109, 49
    %s112 = scalar_lea.vmem [#allocation4], %s111
    %v113 = vld [vmem:[%s112] sm:$0x1]
    %s114 = sld [smem:[#allocation3 + $0x83]]
    %p115 = scmp.gt.s32.totalorder %s114, 0
    %s116 = scalar_select %p115, %s114, 0
    %p117 = scmp.lt.s32.totalorder %s116, 49
    %s118 = scalar_select %p117, %s116, 49
    %s119 = scalar_lea.vmem [#allocation4], %s118
    %v120 = vld [vmem:[%s119] sm:$0x1]
    %s121 = sld [smem:[#allocation3 + $0x4]]
    %p122 = scmp.gt.s32.totalorder %s121, 0
    %s123 = scalar_select %p122, %s121, 0
    %p124 = scmp.lt.s32.totalorder %s123, 49
    %s125 = scalar_select %p124, %s123, 49
    %s126 = scalar_lea.vmem [#allocation4], %s125
    %v127 = vld [vmem:[%s126] sm:$0x1]
    %s128 = sld [smem:[#allocation3 + $0x84]]
    %p129 = scmp.gt.s32.totalorder %s128, 0
    %s130 = scalar_select %p129, %s128, 0
    %p131 = scmp.lt.s32.totalorder %s130, 49
    %s132 = scalar_select %p131, %s130, 49
    %s133 = scalar_lea.vmem [#allocation4], %s132
    %v134 = vld [vmem:[%s133] sm:$0x1]
    %s135 = sld [smem:[#allocation3 + $0x5]]
    %p136 = scmp.gt.s32.totalorder %s135, 0
    %s137 = scalar_select %p136, %s135, 0
    %p138 = scmp.lt.s32.totalorder %s137, 49
    %s139 = scalar_select %p138, %s137, 49
    %s140 = scalar_lea.vmem [#allocation4], %s139
    %v141 = vld [vmem:[%s140] sm:$0x1]
    %s142 = sld [smem:[#allocation3 + $0x85]]
    %p143 = scmp.gt.s32.totalorder %s142, 0
    %s144 = scalar_select %p143, %s142, 0
    %p145 = scmp.lt.s32.totalorder %s144, 49
    %s146 = scalar_select %p145, %s144, 49
    %s147 = scalar_lea.vmem [#allocation4], %s146
    %v148 = vld [vmem:[%s147] sm:$0x1]
    %s149 = sld [smem:[#allocation3 + $0x6]]
    %p150 = scmp.gt.s32.totalorder %s149, 0
    %s151 = scalar_select %p150, %s149, 0
    %p152 = scmp.lt.s32.totalorder %s151, 49
    %s153 = scalar_select %p152, %s151, 49
    %s154 = scalar_lea.vmem [#allocation4], %s153
    %v155 = vld [vmem:[%s154] sm:$0x1]
    %s156 = sld [smem:[#allocation3 + $0x86]]
    %p157 = scmp.gt.s32.totalorder %s156, 0
    %s158 = scalar_select %p157, %s156, 0
    %p159 = scmp.lt.s32.totalorder %s158, 49
    %s160 = scalar_select %p159, %s158, 49
    %s161 = scalar_lea.vmem [#allocation4], %s160
    %v162 = vld [vmem:[%s161] sm:$0x1]
    %s163 = sld [smem:[#allocation3 + $0x7]]
    %p164 = scmp.gt.s32.totalorder %s163, 0
    %s165 = scalar_select %p164, %s163, 0
    %p166 = scmp.lt.s32.totalorder %s165, 49
    %s167 = scalar_select %p166, %s165, 49
    %s168 = scalar_lea.vmem [#allocation4], %s167
    %v169 = vld [vmem:[%s168] sm:$0x1]
    %s170 = sld [smem:[#allocation3 + $0x87]]
    %p171 = scmp.gt.s32.totalorder %s170, 0
    %s172 = scalar_select %p171, %s170, 0
    %p173 = scmp.lt.s32.totalorder %s172, 49
    %s174 = scalar_select %p173, %s172, 49
    %s175 = scalar_lea.vmem [#allocation4], %s174
    %v176 = vld [vmem:[%s175] sm:$0x1]
    %v178 = vlaneseq
    %v179 = vshrl.u32 %v178, 7
    %v180 = vsub.s32 0, %v179
    %v181 = vrot.slane %v78, %v180
    %v184 = vlaneseq
    %v185 = vshrl.u32 %v184, 7
    %v186 = vsub.s32 0, %v185
    %v187 = vrot.slane %v85, %v186
    %v190 = vlaneseq
    %v191 = vshrl.u32 %v190, 7
    %v192 = vsub.s32 0, %v191
    %v193 = vrot.slane %v92, %v192
    %v196 = vlaneseq
    %v197 = vshrl.u32 %v196, 7
    %v198 = vsub.s32 0, %v197
    %v199 = vrot.slane %v99, %v198
    %v202 = vlaneseq
    %v203 = vshrl.u32 %v202, 7
    %v204 = vsub.s32 0, %v203
    %v205 = vrot.slane %v106, %v204
    %v208 = vlaneseq
    %v209 = vshrl.u32 %v208, 7
    %v210 = vsub.s32 0, %v209
    %v211 = vrot.slane %v113, %v210
    %v214 = vlaneseq
    %v215 = vshrl.u32 %v214, 7
    %v216 = vsub.s32 0, %v215
    %v217 = vrot.slane %v120, %v216
    %v220 = vlaneseq
    %v221 = vshrl.u32 %v220, 7
    %v222 = vsub.s32 0, %v221
    %v223 = vrot.slane %v134, %v222
    %v226 = vlaneseq
    %v227 = vshrl.u32 %v226, 7
    %v228 = vsub.s32 0, %v227
    %v229 = vrot.slane %v141, %v228
    %v232 = vlaneseq
    %v233 = vshrl.u32 %v232, 7
    %v234 = vsub.s32 0, %v233
    %v235 = vrot.slane %v148, %v234
    %v238 = vlaneseq
    %v239 = vshrl.u32 %v238, 7
    %v240 = vsub.s32 0, %v239
    %v241 = vrot.slane %v155, %v240
    %v244 = vlaneseq
    %v245 = vshrl.u32 %v244, 7
    %v246 = vsub.s32 0, %v245
    %v247 = vrot.slane %v162, %v246
    %v250 = vlaneseq
    %v251 = vshrl.u32 %v250, 7
    %v252 = vsub.s32 0, %v251
    %v253 = vrot.slane %v169, %v252
    %v256 = vlaneseq
    %v257 = vshrl.u32 %v256, 7
    %v258 = vsub.s32 0, %v257
    %v259 = vrot.slane %v176, %v258
    %vm261 = vcmask 1040384
    %v262 = vsel %vm261, %v71, %v181
    %vm263 = vcmask 1041408
    %v264 = vsel %vm263, %v262, %v187
    %vm265 = vcmask 1042432
    %v266 = vsel %vm265, %v264, %v193
    %vm267 = vcmask 1043456
    %v268 = vsel %vm267, %v266, %v199
    %vm269 = vcmask 1044480
    %v270 = vsel %vm269, %v268, %v205
    %vm271 = vcmask 1045504
    %v272 = vsel %vm271, %v270, %v211
    %vm273 = vcmask 1046528
    %v274 = vsel %vm273, %v272, %v217
    %v275 = vsel %vm261, %v127, %v223
    %v276 = vsel %vm263, %v275, %v229
    %v277 = vsel %vm265, %v276, %v235
    %v278 = vsel %vm267, %v277, %v241
    %v279 = vsel %vm269, %v278, %v247
    %v280 = vsel %vm271, %v279, %v253
    %v281 = vsel %vm273, %v280, %v259
    %v282 = vld [vmem:[#allocation7] sm:$0xff]
    %v283 = vld [vmem:[#allocation7 + $0x8] sm:$0xff]
    %v284 = vld [vmem:[#allocation7 + $0x10] sm:$0xff]
    %v285 = vld [vmem:[#allocation7 + $0x18] sm:$0xff]
    %v286 = vpack.c.bf16 %v283, %v282
    %v287 = vpack.c.bf16 %v285, %v284
    %vm288 = vcmask 261120
    %v290 = vsel %vm288, 0, 0
    %292 = vmatprep.subr.bf16.mxu0 0
    %293 = vmatpush1.bf16.msra.mxu0 %v286
    %294 = vmatprep.subr.bf16.mxu0 0
    %295 = vmatpush1.bf16.msra.mxu0 %v287
    %296 = vmatprep.subr.bf16.mxu0 0
    %297 = vmatpush1.bf16.msra.mxu0 0
    %298 = vmatprep.subr.bf16.mxu0 0
    %299 = vmatpush1.bf16.msra.mxu0 0
    %300 = vmatprep.subr.bf16.mxu0 0
    %301 = vmatpush1.bf16.msra.mxu0 0
    %302 = vmatprep.subr.bf16.mxu0 0
    %303 = vmatpush1.bf16.msra.mxu0 0
    %304 = vmatprep.subr.bf16.mxu0 0
    %305 = vmatpush1.bf16.msra.mxu0 0
    %306 = vmatprep.subr.bf16.mxu0 0
    %307 = vmatpush1.bf16.msra.mxu0 0
    %308 = vmatprep.subr.bf16.mxu0 0
    %309 = vmatpush1.bf16.msra.mxu0 0
    %310 = vmatprep.subr.bf16.mxu0 0
    %311 = vmatpush1.bf16.msra.mxu0 0
    %312 = vmatprep.subr.bf16.mxu0 0
    %313 = vmatpush1.bf16.msra.mxu0 0
    %314 = vmatprep.subr.bf16.mxu0 0
    %315 = vmatpush1.bf16.msra.mxu0 0
    %316 = vmatprep.subr.bf16.mxu0 0
    %317 = vmatpush1.bf16.msra.mxu0 0
    %318 = vmatprep.subr.bf16.mxu0 0
    %319 = vmatpush1.bf16.msra.mxu0 0
    %320 = vmatprep.subr.bf16.mxu0 0
    %321 = vmatpush1.bf16.msra.mxu0 0
    %322 = vmatprep.subr.bf16.mxu0 0
    %323 = vmatpush1.bf16.msra.mxu0 0
    %324 = vmatprep.mubr.bf16.mxu0 0
    %325 = vmatmul.mubr.bf16.gmra.mrb[0].mxu0 %v290
    %v326 = vpop.f32.mrb[0].mxu0
    %v327 = vadd.f32 0.0, %v326
    %v328 = vpop.f32.mrb[0].mxu0
    %v329 = vpop.f32.mrb[0].mxu0
    %v330 = vpop.f32.mrb[0].mxu0
    %331 = vdwg.mxu0
    %v332 = vadd.f32 %v274, %v327
    %v333 = vxor.u32 %v332, 2147483648
    %v334 = vmul.f32 %v333, 1.442695
    %v335 = vpow.pop %v334
    %v336 = vadd.f32 %v335, 1.0
    %v337 = vrcp.pop %v336
    %v338 = vmul.f32 1.0, %v337
    %v339 = vtanh.pop %v332
    %v340 = vmul.f32 %v338, 0.0
    %342 = vrot.lane.b32.xlu0 %v339, 64
    %v343 = vpop.permute.xlu0 %342
    %v345 = vmul.f32 %v338, %v343
    %347 = vrot.lane.b32.xlu0 %v345, 32
    %v348 = vpop.permute.xlu0 %347
    %v350 = vadd.f32 %v340, %v348
    %v351 = vtanh.pop %v350
    %353 = vrot.lane.b32.xlu0 %v351, 64
    %v354 = vpop.permute.xlu0 %353
    %v356 = vmul.f32 %v338, %v354
    %v357 = vpack.c.bf16 %v356, %v356
    %359 = vrot.lane.b32.xlu0 %v357, 32
    %v360 = vpop.permute.xlu0 %359
    %v362 = vsel %vm288, %v360, 0
    %364 = vmatprep.subr.bf16.mxu0 0
    %365 = vmatpush1.bf16.msra.mxu0 %v286
    %366 = vmatprep.subr.bf16.mxu0 0
    %367 = vmatpush1.bf16.msra.mxu0 %v287
    %368 = vmatprep.subr.bf16.mxu0 0
    %369 = vmatpush1.bf16.msra.mxu0 0
    %370 = vmatprep.subr.bf16.mxu0 0
    %371 = vmatpush1.bf16.msra.mxu0 0
    %372 = vmatprep.subr.bf16.mxu0 0
    %373 = vmatpush1.bf16.msra.mxu0 0
    %374 = vmatprep.subr.bf16.mxu0 0
    %375 = vmatpush1.bf16.msra.mxu0 0
    %376 = vmatprep.subr.bf16.mxu0 0
    %377 = vmatpush1.bf16.msra.mxu0 0
    %378 = vmatprep.subr.bf16.mxu0 0
    %379 = vmatpush1.bf16.msra.mxu0 0
    %380 = vmatprep.subr.bf16.mxu0 0
    %381 = vmatpush1.bf16.msra.mxu0 0
    %382 = vmatprep.subr.bf16.mxu0 0
    %383 = vmatpush1.bf16.msra.mxu0 0
    %384 = vmatprep.subr.bf16.mxu0 0
    %385 = vmatpush1.bf16.msra.mxu0 0
    %386 = vmatprep.subr.bf16.mxu0 0
    %387 = vmatpush1.bf16.msra.mxu0 0
    %388 = vmatprep.subr.bf16.mxu0 0
    %389 = vmatpush1.bf16.msra.mxu0 0
    %390 = vmatprep.subr.bf16.mxu0 0
    %391 = vmatpush1.bf16.msra.mxu0 0
    %392 = vmatprep.subr.bf16.mxu0 0
    %393 = vmatpush1.bf16.msra.mxu0 0
    %394 = vmatprep.subr.bf16.mxu0 0
    %395 = vmatpush1.bf16.msra.mxu0 0
    %396 = vmatprep.mubr.bf16.mxu0 0
    %397 = vmatmul.mubr.bf16.gmra.mrb[0].mxu0 %v362
    %v398 = vpop.f32.mrb[0].mxu0
    %v399 = vadd.f32 0.0, %v398
    %v400 = vpop.f32.mrb[0].mxu0
    %v401 = vpop.f32.mrb[0].mxu0
    %v402 = vpop.f32.mrb[0].mxu0
    %403 = vdwg.mxu0
    %v405 = vrot.slane %v399, 6
    %v407 = vadd.f32 %v274, %v405
    %v408 = vxor.u32 %v407, 2147483648
    %v409 = vmul.f32 %v408, 1.442695
    %v410 = vpow.pop %v409
    %v411 = vadd.f32 %v410, 1.0
    %v412 = vrcp.pop %v411
    %v413 = vmul.f32 1.0, %v412
    %v414 = vtanh.pop %v407
    %v416 = vrot.slane %v350, 6
    %v418 = vmul.f32 %v413, %v416
    %420 = vrot.lane.b32.xlu0 %v414, 64
    %v421 = vpop.permute.xlu0 %420
    %v423 = vmul.f32 %v413, %v421
    %425 = vrot.lane.b32.xlu0 %v423, 32
    %v426 = vpop.permute.xlu0 %425
    %v428 = vadd.f32 %v418, %v426
    %v429 = vtanh.pop %v428
    %431 = vrot.lane.b32.xlu0 %v429, 64
    %v432 = vpop.permute.xlu0 %431
    %v434 = vmul.f32 %v413, %v432
    %v435 = vpack.c.bf16 %v434, %v434
    %v437 = vrot.slane %v435, 1
    %438 = vrot.lane.b32.xlu0 %v437, 32
    %v439 = vpop.permute.xlu0 %438
    %v441 = vsel %vm288, %v439, 0
    %443 = vmatprep.subr.bf16.mxu0 0
    %444 = vmatpush1.bf16.msra.mxu0 %v286
    %445 = vmatprep.subr.bf16.mxu0 0
    %446 = vmatpush1.bf16.msra.mxu0 %v287
    %447 = vmatprep.subr.bf16.mxu0 0
    %448 = vmatpush1.bf16.msra.mxu0 0
    %449 = vmatprep.subr.bf16.mxu0 0
    %450 = vmatpush1.bf16.msra.mxu0 0
    %451 = vmatprep.subr.bf16.mxu0 0
    %452 = vmatpush1.bf16.msra.mxu0 0
    %453 = vmatprep.subr.bf16.mxu0 0
    %454 = vmatpush1.bf16.msra.mxu0 0
    %455 = vmatprep.subr.bf16.mxu0 0
    %456 = vmatpush1.bf16.msra.mxu0 0
    %457 = vmatprep.subr.bf16.mxu0 0
    %458 = vmatpush1.bf16.msra.mxu0 0
    %459 = vmatprep.subr.bf16.mxu0 0
    %460 = vmatpush1.bf16.msra.mxu0 0
    %461 = vmatprep.subr.bf16.mxu0 0
    %462 = vmatpush1.bf16.msra.mxu0 0
    %463 = vmatprep.subr.bf16.mxu0 0
    %464 = vmatpush1.bf16.msra.mxu0 0
    %465 = vmatprep.subr.bf16.mxu0 0
    %466 = vmatpush1.bf16.msra.mxu0 0
    %467 = vmatprep.subr.bf16.mxu0 0
    %468 = vmatpush1.bf16.msra.mxu0 0
    %469 = vmatprep.subr.bf16.mxu0 0
    %470 = vmatpush1.bf16.msra.mxu0 0
    %471 = vmatprep.subr.bf16.mxu0 0
    %472 = vmatpush1.bf16.msra.mxu0 0
    %473 = vmatprep.subr.bf16.mxu0 0
    %474 = vmatpush1.bf16.msra.mxu0 0
    %475 = vmatprep.mubr.bf16.mxu0 0
    %476 = vmatmul.mubr.bf16.gmra.mrb[0].mxu0 %v441
    %v477 = vpop.f32.mrb[0].mxu0
    %v478 = vadd.f32 0.0, %v477
    %v479 = vpop.f32.mrb[0].mxu0
    %v480 = vpop.f32.mrb[0].mxu0
    %v481 = vpop.f32.mrb[0].mxu0
    %482 = vdwg.mxu0
    %v484 = vrot.slane %v478, 4
    %v486 = vadd.f32 %v274, %v484
    %v487 = vxor.u32 %v486, 2147483648
    %v488 = vmul.f32 %v487, 1.442695
    %v489 = vpow.pop %v488
    %v490 = vadd.f32 %v489, 1.0
    %v491 = vrcp.pop %v490
    %v492 = vmul.f32 1.0, %v491
    %v493 = vtanh.pop %v486
    %v495 = vrot.slane %v428, 6
    %v497 = vmul.f32 %v492, %v495
    %499 = vrot.lane.b32.xlu0 %v493, 64
    %v500 = vpop.permute.xlu0 %499
    %v502 = vmul.f32 %v492, %v500
    %504 = vrot.lane.b32.xlu0 %v502, 32
    %v505 = vpop.permute.xlu0 %504
    %v507 = vadd.f32 %v497, %v505
    %v508 = vtanh.pop %v507
    %510 = vrot.lane.b32.xlu0 %v508, 64
    %v511 = vpop.permute.xlu0 %510
    %v513 = vmul.f32 %v492, %v511
    %v514 = vpack.c.bf16 %v513, %v513
    %v516 = vrot.slane %v514, 2
    %517 = vrot.lane.b32.xlu0 %v516, 32
    %v518 = vpop.permute.xlu0 %517
    %v520 = vsel %vm288, %v518, 0
    %522 = vmatprep.subr.bf16.mxu0 0
    %523 = vmatpush1.bf16.msra.mxu0 %v286
    %524 = vmatprep.subr.bf16.mxu0 0
    %525 = vmatpush1.bf16.msra.mxu0 %v287
    %526 = vmatprep.subr.bf16.mxu0 0
    %527 = vmatpush1.bf16.msra.mxu0 0
    %528 = vmatprep.subr.bf16.mxu0 0
    %529 = vmatpush1.bf16.msra.mxu0 0
    %530 = vmatprep.subr.bf16.mxu0 0
    %531 = vmatpush1.bf16.msra.mxu0 0
    %532 = vmatprep.subr.bf16.mxu0 0
    %533 = vmatpush1.bf16.msra.mxu0 0
    %534 = vmatprep.subr.bf16.mxu0 0
    %535 = vmatpush1.bf16.msra.mxu0 0
    %536 = vmatprep.subr.bf16.mxu0 0
    %537 = vmatpush1.bf16.msra.mxu0 0
    %538 = vmatprep.subr.bf16.mxu0 0
    %539 = vmatpush1.bf16.msra.mxu0 0
    %540 = vmatprep.subr.bf16.mxu0 0
    %541 = vmatpush1.bf16.msra.mxu0 0
    %542 = vmatprep.subr.bf16.mxu0 0
    %543 = vmatpush1.bf16.msra.mxu0 0
    %544 = vmatprep.subr.bf16.mxu0 0
    %545 = vmatpush1.bf16.msra.mxu0 0
    %546 = vmatprep.subr.bf16.mxu0 0
    %547 = vmatpush1.bf16.msra.mxu0 0
    %548 = vmatprep.subr.bf16.mxu0 0
    %549 = vmatpush1.bf16.msra.mxu0 0
    %550 = vmatprep.subr.bf16.mxu0 0
    %551 = vmatpush1.bf16.msra.mxu0 0
    %552 = vmatprep.subr.bf16.mxu0 0
    %553 = vmatpush1.bf16.msra.mxu0 0
    %554 = vmatprep.mubr.bf16.mxu0 0
    %555 = vmatmul.mubr.bf16.gmra.mrb[0].mxu0 %v520
    %v556 = vpop.f32.mrb[0].mxu0
    %v557 = vadd.f32 0.0, %v556
    %v558 = vpop.f32.mrb[0].mxu0
    %v559 = vpop.f32.mrb[0].mxu0
    %v560 = vpop.f32.mrb[0].mxu0
    %561 = vdwg.mxu0
    %v563 = vrot.slane %v557, 2
    %v565 = vadd.f32 %v274, %v563
    %v566 = vxor.u32 %v565, 2147483648
    %v567 = vmul.f32 %v566, 1.442695
    %v568 = vpow.pop %v567
    %v569 = vadd.f32 %v568, 1.0
    %v570 = vrcp.pop %v569
    %v571 = vmul.f32 1.0, %v570
    %v572 = vtanh.pop %v565
    %v574 = vrot.slane %v507, 6
    %v576 = vmul.f32 %v571, %v574
    %578 = vrot.lane.b32.xlu0 %v572, 64
    %v579 = vpop.permute.xlu0 %578
    %v581 = vmul.f32 %v571, %v579
    %583 = vrot.lane.b32.xlu0 %v581, 32
    %v584 = vpop.permute.xlu0 %583
    %v586 = vadd.f32 %v576, %v584
    %v587 = vtanh.pop %v586
    %589 = vrot.lane.b32.xlu0 %v587, 64
    %v590 = vpop.permute.xlu0 %589
    %v592 = vmul.f32 %v571, %v590
    %v593 = vpack.c.bf16 %v592, %v592
    %v595 = vrot.slane %v593, 3
    %596 = vrot.lane.b32.xlu0 %v595, 32
    %v597 = vpop.permute.xlu0 %596
    %v599 = vsel %vm288, %v597, 0
    %601 = vmatprep.subr.bf16.mxu0 0
    %602 = vmatpush1.bf16.msra.mxu0 %v286
    %603 = vmatprep.subr.bf16.mxu0 0
    %604 = vmatpush1.bf16.msra.mxu0 %v287
    %605 = vmatprep.subr.bf16.mxu0 0
    %606 = vmatpush1.bf16.msra.mxu0 0
    %607 = vmatprep.subr.bf16.mxu0 0
    %608 = vmatpush1.bf16.msra.mxu0 0
    %609 = vmatprep.subr.bf16.mxu0 0
    %610 = vmatpush1.bf16.msra.mxu0 0
    %611 = vmatprep.subr.bf16.mxu0 0
    %612 = vmatpush1.bf16.msra.mxu0 0
    %613 = vmatprep.subr.bf16.mxu0 0
    %614 = vmatpush1.bf16.msra.mxu0 0
    %615 = vmatprep.subr.bf16.mxu0 0
    %616 = vmatpush1.bf16.msra.mxu0 0
    %617 = vmatprep.subr.bf16.mxu0 0
    %618 = vmatpush1.bf16.msra.mxu0 0
    %619 = vmatprep.subr.bf16.mxu0 0
    %620 = vmatpush1.bf16.msra.mxu0 0
    %621 = vmatprep.subr.bf16.mxu0 0
    %622 = vmatpush1.bf16.msra.mxu0 0
    %623 = vmatprep.subr.bf16.mxu0 0
    %624 = vmatpush1.bf16.msra.mxu0 0
    %625 = vmatprep.subr.bf16.mxu0 0
    %626 = vmatpush1.bf16.msra.mxu0 0
    %627 = vmatprep.subr.bf16.mxu0 0
    %628 = vmatpush1.bf16.msra.mxu0 0
    %629 = vmatprep.subr.bf16.mxu0 0
    %630 = vmatpush1.bf16.msra.mxu0 0
    %631 = vmatprep.subr.bf16.mxu0 0
    %632 = vmatpush1.bf16.msra.mxu0 0
    %633 = vmatprep.mubr.bf16.mxu0 0
    %634 = vmatmul.mubr.bf16.gmra.mrb[0].mxu0 %v599
    %v635 = vpop.f32.mrb[0].mxu0
    %v636 = vadd.f32 0.0, %v635
    %v637 = vpop.f32.mrb[0].mxu0
    %v638 = vpop.f32.mrb[0].mxu0
    %v639 = vpop.f32.mrb[0].mxu0
    %640 = vdwg.mxu0
    %v641 = vadd.f32 %v281, %v636
    %v642 = vxor.u32 %v641, 2147483648
    %v643 = vmul.f32 %v642, 1.442695
    %v644 = vpow.pop %v643
    %v645 = vadd.f32 %v644, 1.0
    %v646 = vrcp.pop %v645
    %v647 = vmul.f32 1.0, %v646
    %v648 = vtanh.pop %v641
    %v650 = vrot.slane %v586, 6
    %v652 = vmul.f32 %v647, %v650
    %654 = vrot.lane.b32.xlu0 %v648, 64
    %v655 = vpop.permute.xlu0 %654
    %v657 = vmul.f32 %v647, %v655
    %659 = vrot.lane.b32.xlu0 %v657, 32
    %v660 = vpop.permute.xlu0 %659
    %v662 = vadd.f32 %v652, %v660
    %v663 = vtanh.pop %v662
    %665 = vrot.lane.b32.xlu0 %v663, 64
    %v666 = vpop.permute.xlu0 %665
    %v668 = vmul.f32 %v647, %v666
    %v669 = vpack.c.bf16 %v668, %v668
    %671 = vrot.lane.b32.xlu0 %v669, 32
    %v672 = vpop.permute.xlu0 %671
    %v674 = vsel %vm288, %v672, 0
    %676 = vmatprep.subr.bf16.mxu0 0
    %677 = vmatpush1.bf16.msra.mxu0 %v286
    %678 = vmatprep.subr.bf16.mxu0 0
    %679 = vmatpush1.bf16.msra.mxu0 %v287
    %680 = vmatprep.subr.bf16.mxu0 0
    %681 = vmatpush1.bf16.msra.mxu0 0
    %682 = vmatprep.subr.bf16.mxu0 0
    %683 = vmatpush1.bf16.msra.mxu0 0
    %684 = vmatprep.subr.bf16.mxu0 0
    %685 = vmatpush1.bf16.msra.mxu0 0
    %686 = vmatprep.subr.bf16.mxu0 0
    %687 = vmatpush1.bf16.msra.mxu0 0
    %688 = vmatprep.subr.bf16.mxu0 0
    %689 = vmatpush1.bf16.msra.mxu0 0
    %690 = vmatprep.subr.bf16.mxu0 0
    %691 = vmatpush1.bf16.msra.mxu0 0
    %692 = vmatprep.subr.bf16.mxu0 0
    %693 = vmatpush1.bf16.msra.mxu0 0
    %694 = vmatprep.subr.bf16.mxu0 0
    %695 = vmatpush1.bf16.msra.mxu0 0
    %696 = vmatprep.subr.bf16.mxu0 0
    %697 = vmatpush1.bf16.msra.mxu0 0
    %698 = vmatprep.subr.bf16.mxu0 0
    %699 = vmatpush1.bf16.msra.mxu0 0
    %700 = vmatprep.subr.bf16.mxu0 0
    %701 = vmatpush1.bf16.msra.mxu0 0
    %702 = vmatprep.subr.bf16.mxu0 0
    %703 = vmatpush1.bf16.msra.mxu0 0
    %704 = vmatprep.subr.bf16.mxu0 0
    %705 = vmatpush1.bf16.msra.mxu0 0
    %706 = vmatprep.subr.bf16.mxu0 0
    %707 = vmatpush1.bf16.msra.mxu0 0
    %708 = vmatprep.mubr.bf16.mxu0 0
    %709 = vmatmul.mubr.bf16.gmra.mrb[0].mxu0 %v674
    %v710 = vpop.f32.mrb[0].mxu0
    %v711 = vadd.f32 0.0, %v710
    %v712 = vpop.f32.mrb[0].mxu0
    %v713 = vpop.f32.mrb[0].mxu0
    %v714 = vpop.f32.mrb[0].mxu0
    %715 = vdwg.mxu0
    %v717 = vrot.slane %v711, 6
    %v719 = vadd.f32 %v281, %v717
    %v720 = vxor.u32 %v719, 2147483648
    %v721 = vmul.f32 %v720, 1.442695
    %v722 = vpow.pop %v721
    %v723 = vadd.f32 %v722, 1.0
    %v724 = vrcp.pop %v723
    %v725 = vmul.f32 1.0, %v724
    %v726 = vtanh.pop %v719
    %v728 = vrot.slane %v662, 6
    %v730 = vmul.f32 %v725, %v728
    %732 = vrot.lane.b32.xlu0 %v726, 64
    %v733 = vpop.permute.xlu0 %732
    %v735 = vmul.f32 %v725, %v733
    %737 = vrot.lane.b32.xlu0 %v735, 32
    %v738 = vpop.permute.xlu0 %737
    %v740 = vadd.f32 %v730, %v738
    %v741 = vtanh.pop %v740
    %743 = vrot.lane.b32.xlu0 %v741, 64
    %v744 = vpop.permute.xlu0 %743
    %v746 = vmul.f32 %v725, %v744
    %v747 = vpack.c.bf16 %v746, %v746
    %v749 = vrot.slane %v747, 1
    %750 = vrot.lane.b32.xlu0 %v749, 32
    %v751 = vpop.permute.xlu0 %750
    %v753 = vsel %vm288, %v751, 0
    %755 = vmatprep.subr.bf16.mxu0 0
    %756 = vmatpush1.bf16.msra.mxu0 %v286
    %757 = vmatprep.subr.bf16.mxu0 0
    %758 = vmatpush1.bf16.msra.mxu0 %v287
    %759 = vmatprep.subr.bf16.mxu0 0
    %760 = vmatpush1.bf16.msra.mxu0 0
    %761 = vmatprep.subr.bf16.mxu0 0
    %762 = vmatpush1.bf16.msra.mxu0 0
    %763 = vmatprep.subr.bf16.mxu0 0
    %764 = vmatpush1.bf16.msra.mxu0 0
    %765 = vmatprep.subr.bf16.mxu0 0
    %766 = vmatpush1.bf16.msra.mxu0 0
    %767 = vmatprep.subr.bf16.mxu0 0
    %768 = vmatpush1.bf16.msra.mxu0 0
    %769 = vmatprep.subr.bf16.mxu0 0
    %770 = vmatpush1.bf16.msra.mxu0 0
    %771 = vmatprep.subr.bf16.mxu0 0
    %772 = vmatpush1.bf16.msra.mxu0 0
    %773 = vmatprep.subr.bf16.mxu0 0
    %774 = vmatpush1.bf16.msra.mxu0 0
    %775 = vmatprep.subr.bf16.mxu0 0
    %776 = vmatpush1.bf16.msra.mxu0 0
    %777 = vmatprep.subr.bf16.mxu0 0
    %778 = vmatpush1.bf16.msra.mxu0 0
    %779 = vmatprep.subr.bf16.mxu0 0
    %780 = vmatpush1.bf16.msra.mxu0 0
    %781 = vmatprep.subr.bf16.mxu0 0
    %782 = vmatpush1.bf16.msra.mxu0 0
    %783 = vmatprep.subr.bf16.mxu0 0
    %784 = vmatpush1.bf16.msra.mxu0 0
    %785 = vmatprep.subr.bf16.mxu0 0
    %786 = vmatpush1.bf16.msra.mxu0 0
    %787 = vmatprep.mubr.bf16.mxu0 0
    %788 = vmatmul.mubr.bf16.gmra.mrb[0].mxu0 %v753
    %v789 = vpop.f32.mrb[0].mxu0
    %v790 = vadd.f32 0.0, %v789
    %v791 = vpop.f32.mrb[0].mxu0
    %v792 = vpop.f32.mrb[0].mxu0
    %v793 = vpop.f32.mrb[0].mxu0
    %794 = vdwg.mxu0
    %v796 = vrot.slane %v790, 4
    %v798 = vadd.f32 %v281, %v796
    %v799 = vxor.u32 %v798, 2147483648
    %v800 = vmul.f32 %v799, 1.442695
    %v801 = vpow.pop %v800
    %v802 = vadd.f32 %v801, 1.0
    %v803 = vrcp.pop %v802
    %v804 = vmul.f32 1.0, %v803
    %v805 = vtanh.pop %v798
    %v807 = vrot.slane %v740, 6
    %v809 = vmul.f32 %v804, %v807
    %811 = vrot.lane.b32.xlu0 %v805, 64
    %v812 = vpop.permute.xlu0 %811
    %v814 = vmul.f32 %v804, %v812
    %816 = vrot.lane.b32.xlu0 %v814, 32
    %v817 = vpop.permute.xlu0 %816
    %v819 = vadd.f32 %v809, %v817
    %v820 = vtanh.pop %v819
    %822 = vrot.lane.b32.xlu0 %v820, 64
    %v823 = vpop.permute.xlu0 %822
    %v825 = vmul.f32 %v804, %v823
    %v826 = vpack.c.bf16 %v825, %v825
    %v828 = vrot.slane %v826, 2
    %829 = vrot.lane.b32.xlu0 %v828, 32
    %v830 = vpop.permute.xlu0 %829
    %v832 = vsel %vm288, %v830, 0
    %834 = vmatprep.subr.bf16.mxu0 0
    %835 = vmatpush1.bf16.msra.mxu0 %v286
    %836 = vmatprep.subr.bf16.mxu0 0
    %837 = vmatpush1.bf16.msra.mxu0 %v287
    %838 = vmatprep.subr.bf16.mxu0 0
    %839 = vmatpush1.bf16.msra.mxu0 0
    %840 = vmatprep.subr.bf16.mxu0 0
    %841 = vmatpush1.bf16.msra.mxu0 0
    %842 = vmatprep.subr.bf16.mxu0 0
    %843 = vmatpush1.bf16.msra.mxu0 0
    %844 = vmatprep.subr.bf16.mxu0 0
    %845 = vmatpush1.bf16.msra.mxu0 0
    %846 = vmatprep.subr.bf16.mxu0 0
    %847 = vmatpush1.bf16.msra.mxu0 0
    %848 = vmatprep.subr.bf16.mxu0 0
    %849 = vmatpush1.bf16.msra.mxu0 0
    %850 = vmatprep.subr.bf16.mxu0 0
    %851 = vmatpush1.bf16.msra.mxu0 0
    %852 = vmatprep.subr.bf16.mxu0 0
    %853 = vmatpush1.bf16.msra.mxu0 0
    %854 = vmatprep.subr.bf16.mxu0 0
    %855 = vmatpush1.bf16.msra.mxu0 0
    %856 = vmatprep.subr.bf16.mxu0 0
    %857 = vmatpush1.bf16.msra.mxu0 0
    %858 = vmatprep.subr.bf16.mxu0 0
    %859 = vmatpush1.bf16.msra.mxu0 0
    %860 = vmatprep.subr.bf16.mxu0 0
    %861 = vmatpush1.bf16.msra.mxu0 0
    %862 = vmatprep.subr.bf16.mxu0 0
    %863 = vmatpush1.bf16.msra.mxu0 0
    %864 = vmatprep.subr.bf16.mxu0 0
    %865 = vmatpush1.bf16.msra.mxu0 0
    %866 = vmatprep.mubr.bf16.mxu0 0
    %867 = vmatmul.mubr.bf16.gmra.mrb[0].mxu0 %v832
    %v868 = vpop.f32.mrb[0].mxu0
    %v869 = vadd.f32 0.0, %v868
    %v870 = vpop.f32.mrb[0].mxu0
    %v871 = vpop.f32.mrb[0].mxu0
    %v872 = vpop.f32.mrb[0].mxu0
    %873 = vdwg.mxu0
    %v875 = vrot.slane %v869, 2
    %v877 = vadd.f32 %v281, %v875
    %v878 = vxor.u32 %v877, 2147483648
    %v879 = vmul.f32 %v878, 1.442695
    %v880 = vpow.pop %v879
    %v881 = vadd.f32 %v880, 1.0
    %v882 = vrcp.pop %v881
    %v883 = vmul.f32 1.0, %v882
    %v884 = vtanh.pop %v877
    %v886 = vrot.slane %v819, 6
    %v888 = vmul.f32 %v883, %v886
    %890 = vrot.lane.b32.xlu0 %v884, 64
    %v891 = vpop.permute.xlu0 %890
    %v893 = vmul.f32 %v883, %v891
    %895 = vrot.lane.b32.xlu0 %v893, 32
    %v896 = vpop.permute.xlu0 %895
    %v898 = vadd.f32 %v888, %v896
    %v899 = vtanh.pop %v898
    %901 = vrot.lane.b32.xlu0 %v899, 64
    %v902 = vpop.permute.xlu0 %901
    %v904 = vmul.f32 %v883, %v902
    %v905 = vsel %vm263, %v356, %v434
    %v906 = vsel %vm267, %v905, %v513
    %v907 = vsel %vm271, %v906, %v592
    %v908 = vsel %vm263, %v668, %v746
    %v909 = vsel %vm267, %v908, %v825
    %v910 = vsel %vm271, %v909, %v904
    %v911 = vld [vmem:[#allocation9] sm:$0xff]
    %v912 = vld [vmem:[#allocation9 + $0x8] sm:$0xff]
    %v913 = vld [vmem:[#allocation9 + $0x10] sm:$0xff]
    %v914 = vld [vmem:[#allocation9 + $0x18] sm:$0xff]
    %917 = vrot.lane.b32.xlu0 %v907, 32
    %v918 = vpop.permute.xlu0 %917
    %919 = vrot.lane.b32.xlu0 %v910, 32
    %v920 = vpop.permute.xlu0 %919
    %v921 = vsel %vm288, %v918, 0
    %v923 = vsel %vm288, %v920, 0
    %925 = vmatprep.subr.mxu0 0.0
    %926 = vmatpush1.msra.mxu0 %v911
    %927 = vmatprep.subr.mxu0 0.0
    %928 = vmatpush1.msra.mxu0 %v912
    %929 = vmatprep.subr.mxu0 0.0
    %930 = vmatpush1.msra.mxu0 %v913
    %931 = vmatprep.subr.mxu0 0.0
    %932 = vmatpush1.msra.mxu0 %v914
    %933 = vmatprep.subr.mxu0 0.0
    %934 = vmatpush1.msra.mxu0 0.0
    %935 = vmatprep.subr.mxu0 0.0
    %936 = vmatpush1.msra.mxu0 0.0
    %937 = vmatprep.subr.mxu0 0.0
    %938 = vmatpush1.msra.mxu0 0.0
    %939 = vmatprep.subr.mxu0 0.0
    %940 = vmatpush1.msra.mxu0 0.0
    %941 = vmatprep.subr.mxu0 0.0
    %942 = vmatpush1.msra.mxu0 0.0
    %943 = vmatprep.subr.mxu0 0.0
    %944 = vmatpush1.msra.mxu0 0.0
    %945 = vmatprep.subr.mxu0 0.0
    %946 = vmatpush1.msra.mxu0 0.0
    %947 = vmatprep.subr.mxu0 0.0
    %948 = vmatpush1.msra.mxu0 0.0
    %949 = vmatprep.subr.mxu0 0.0
    %950 = vmatpush1.msra.mxu0 0.0
    %951 = vmatprep.subr.mxu0 0.0
    %952 = vmatpush1.msra.mxu0 0.0
    %953 = vmatprep.subr.mxu0 0.0
    %954 = vmatpush1.msra.mxu0 0.0
    %955 = vmatprep.subr.mxu0 0.0
    %956 = vmatpush1.msra.mxu0 0.0
    %957 = vmatprep.subr.mxu0 0.0
    %958 = vmatpush1.msra.mxu0 0.0
    %959 = vmatprep.subr.mxu0 0.0
    %960 = vmatpush1.msra.mxu0 0.0
    %961 = vmatprep.subr.mxu0 0.0
    %962 = vmatpush1.msra.mxu0 0.0
    %963 = vmatprep.subr.mxu0 0.0
    %964 = vmatpush1.msra.mxu0 0.0
    %965 = vmatprep.subr.mxu0 0.0
    %966 = vmatpush1.msra.mxu0 0.0
    %967 = vmatprep.subr.mxu0 0.0
    %968 = vmatpush1.msra.mxu0 0.0
    %969 = vmatprep.subr.mxu0 0.0
    %970 = vmatpush1.msra.mxu0 0.0
    %971 = vmatprep.subr.mxu0 0.0
    %972 = vmatpush1.msra.mxu0 0.0
    %973 = vmatprep.subr.mxu0 0.0
    %974 = vmatpush1.msra.mxu0 0.0
    %975 = vmatprep.subr.mxu0 0.0
    %976 = vmatpush1.msra.mxu0 0.0
    %977 = vmatprep.subr.mxu0 0.0
    %978 = vmatpush1.msra.mxu0 0.0
    %979 = vmatprep.subr.mxu0 0.0
    %980 = vmatpush1.msra.mxu0 0.0
    %981 = vmatprep.subr.mxu0 0.0
    %982 = vmatpush1.msra.mxu0 0.0
    %983 = vmatprep.subr.mxu0 0.0
    %984 = vmatpush1.msra.mxu0 0.0
    %985 = vmatprep.subr.mxu0 0.0
    %986 = vmatpush1.msra.mxu0 0.0
    %987 = vmatprep.subr.mxu0 0.0
    %988 = vmatpush1.msra.mxu0 0.0
    %989 = vmatprep.mubr.f32.mxu0 0.0
    %990 = vmatmul.mubr.f32.gmra.mrb[0].mxu0 %v921
    %v991 = vpop.f32.mrb[0].mxu0
    %v992 = vadd.f32 0.0, %v991
    %v993 = vpop.f32.mrb[0].mxu0
    %994 = vmatprep.mubr.f32.mxu0 0.0
    %995 = vmatmul.mubr.f32.gmra.mrb[0].mxu0 %v923
    %v996 = vpop.f32.mrb[0].mxu0
    %v997 = vadd.f32 0.0, %v996
    %v998 = vpop.f32.mrb[0].mxu0
    %999 = vdwg.mxu0
    %v1000 = vlaneseq
    %v1001 = vand.u32 %v1000, 127
    %v1002 = vlaneseq
    %v1003 = vshrl.u32 %v1002, 7
    %v1004 = vadd.s32 %v1003, 8
    %v1005 = vmul.u32 %v1003, 8
    %v1006 = vmul.u32 %v1004, 8
    %vm1007 = vcmp.ge.s32.totalorder %v1001, %v1005
    %vm1008 = vcmp.ge.s32.totalorder %v1001, %v1006
    %v1009 = vadd.s32 %v1005, 8
    %v1010 = vadd.s32 %v1006, 8
    %vm1011 = vcmp.lt.s32.totalorder %v1001, %v1009
    %vm1012 = vcmp.lt.s32.totalorder %v1001, %v1010
    %vm1013 = vmand %vm1007, %vm1011
    %vm1014 = vmand %vm1008, %vm1012
    %v1015 = vsel %vm1013, %v992, 0.0
    %v1016 = vsel %vm1014, %v997, 0.0
    %v1017 = vadd.f32 %v1015, %v1016
    %v1018 = vrot.slane %v1017, 4
    %v1019 = vadd.f32 %v1017, %v1018
    %v1020 = vrot.slane %v1019, 2
    %v1021 = vadd.f32 %v1019, %v1020
    %v1022 = vrot.slane %v1021, 1
    %v1023 = vadd.f32 %v1021, %v1022
    %v1024 = vld [vmem:[%s4] sm:$0x1]
    %v1025 = vadd.f32 %v1023, %v1024
    %1026 = vst [vmem:[#allocation10] sm:$0x1] %v1025
    // Predicated region
    $region30: #{tpu_custom_call.1} parent=1 // pred_check
      _
    $region31: #{tpu_custom_call.1} parent=1 // pred_check_branch
      %1028 = sbr.rel (0) target = $region33
    $region32: #{tpu_custom_call.1} parent=1 // pred_region
      %s1030 = ssub.s32 16, 16
      %1031 = vsyncadd [#allocation6], %s1030
      %s1033 = sshll.u32 [#allocation10], 4
      %s1034 = int_to_ptr.vmem [resolvable:$true] %s1033
      %1036 = dma.vmem_to_hbm [thread:$0]  %s1034, 16, %s5, [#allocation6]
    $region33: #{tpu_custom_call.1} parent=1 // pred_fallthru
      _
    // Predicated region
    $region34: #{tpu_custom_call.1} parent=1 // pred_check
      _
    $region35: #{tpu_custom_call.1} parent=1 // pred_check_branch
      %1038 = sbr.rel (0) target = $region37
    $region36: #{tpu_custom_call.1} parent=1 // pred_region
      %1039 = dma.done [#allocation6], 16
    $region37: #{tpu_custom_call.1} parent=1 // pred_fallthru
      _
    %1040 = vsyncpa [#allocation5], 1
    %1041 = vsyncpa [#allocation8], 1
    %1042 = vsyncpa [#allocation6], 1

</llo_original>
